<compile_context>
chip_gen: v5e
topology: v5e:2x2
jax: 0.10.0
libtpu: 0.0.40
codegen_flags: <defaults>
</compile_context>

<pallas_src>
import jax
import jax.numpy as jnp
from jax.experimental import pallas as pl
from jax.experimental.pallas import tpu as pltpu

LANE = 128
CS = 8                       # sublane rows per in-register chunk (1 vreg / f32)
CHUNK = CS * LANE            # anchors per chunk = 1024
MAX_C_TILE = 16 * 1024       # anchors DMA'd per grid step (multiple of CHUNK)


def _keep_float(x):
    return x if jnp.issubdtype(x.dtype, jnp.floating) else x.astype(jnp.float32)


def ainnoface_loss_pallas(ss_proposal, anchors, ground_truth,
                          ss_low=0.4, ss_high=0.5, max_c_tile=MAX_C_TILE):
    """ss_proposal: (B, C, >=5), anchors: (C, 4), ground_truth: (B, K, 4), xywh."""
    B, C, _ = ss_proposal.shape
    K = ground_truth.shape[1]

    max_c_tile = max(CHUNK, (max_c_tile // CHUNK) * CHUNK)
    c_tile = min(max_c_tile, ((C + CHUNK - 1) // CHUNK) * CHUNK)
    S = c_tile // LANE                   # sublane rows per DMA tile (mult of 8)
    n_chunks = S // CS
    NT = -(-C // c_tile)                 # number of C tiles
    C_pad = NT * c_tile

    # ---- wrapper-side packing: coordinate-major, C packed into (S, 128) ----
    anc = jnp.transpose(_keep_float(anchors), (1, 0))                  # (4, C)
    anc = jnp.pad(anc, ((0, 0), (0, C_pad - C)))
    anc = anc.reshape(4, NT, S, LANE)

    prop = jnp.transpose(_keep_float(ss_proposal[..., :5]), (0, 2, 1))  # (B,5,C)
    prop = jnp.pad(prop, ((0, 0), (0, 0), (0, C_pad - C)))
    prop = prop.reshape(B, 5, NT, S, LANE)

    gt_flat = ground_truth.astype(jnp.float32).reshape(B * K * 4)       # -> SMEM
    four_k = 4 * K

    def kernel(gt_smem, anc_ref, prop_ref, out_ref):
        ct = pl.program_id(0)
        b = pl.program_id(1)

        if C_pad != C:   # hoisted per-chunk anchor-index offsets for the mask
            sub = jax.lax.broadcasted_iota(jnp.int32, (CS, LANE), 0)
            lane = jax.lax.broadcasted_iota(jnp.int32, (CS, LANE), 1)
            in_chunk_idx = sub * LANE + lane

        def chunk_body(ch, accs):
            acc_sp, acc_sn, acc_str, acc_pc, acc_nc = accs
            r0 = pl.multiple_of(ch * CS, CS)
            rows = pl.ds(r0, CS)

            ax = anc_ref[0, rows, :].astype(jnp.float32)
            ay = anc_ref[1, rows, :].astype(jnp.float32)
            aw = anc_ref[2, rows, :].astype(jnp.float32)
            ah = anc_ref[3, rows, :].astype(jnp.float32)
            ax2 = ax + aw
            ay2 = ay + ah
            area_a = aw * ah

            # Running argmax over K GT boxes.  Carries are (inter, union) of
            # the best box (divide hoisted out of the loop) plus the selected
            # target box; all carries are single (CS, LANE) vregs.
            def k_body(k, carry):
                bi, bu, tx, ty, tw, th = carry
                base = b * four_k + 4 * k
                gx = gt_smem[base + 0]
                gy = gt_smem[base + 1]
                gw = gt_smem[base + 2]
                gh = gt_smem[base + 3]
                ix1 = jnp.maximum(ax, gx)
                iy1 = jnp.maximum(ay, gy)
                ix2 = jnp.minimum(ax2, gx + gw)
                iy2 = jnp.minimum(ay2, gy + gh)
                inter = jnp.maximum(ix2 - ix1, 0.0) * jnp.maximum(iy2 - iy1, 0.0)
                union = area_a + gw * gh - inter
                # iou > best_iou for positive unions; strict '>' => first argmax
                upd = inter * bu > bi * union
                return (jnp.where(upd, inter, bi), jnp.where(upd, union, bu),
                        jnp.where(upd, gx, tx), jnp.where(upd, gy, ty),
                        jnp.where(upd, gw, tw), jnp.where(upd, gh, th))

            zeros = jnp.zeros((CS, LANE), jnp.float32)
            init = (jnp.full((CS, LANE), -1.0, jnp.float32),
                    jnp.ones((CS, LANE), jnp.float32),
                    zeros, zeros, zeros, zeros)
            bi, bu, tx, ty, tw, th = jax.lax.fori_loop(
                0, K, k_body, init, unroll=(K <= 16))

            score = bi / bu                       # exact: thresholds match ref
            pos = score >= ss_high
            neg = score < ss_low
            if C_pad != C:                        # mask out padded anchors
                valid = (ct * c_tile + r0 * LANE + in_chunk_idx) < C
                pos = jnp.logical_and(pos, valid)
                neg = jnp.logical_and(neg, valid)

            # ---- classification: sigmoid focal loss (alpha=0.25, gamma=2) ----
            x = prop_ref[4, rows, :].astype(jnp.float32)   # class logits
            e = jnp.exp(-jnp.abs(x))                       # shared exp
            log_term = jnp.log1p(e)
            relu_x = jnp.maximum(x, 0.0)
            s = 1.0 / (1.0 + e)
            p = jnp.where(x >= 0, s, e * s)                # sigmoid(x)
            one_m_p = jnp.where(x >= 0, e * s, s)          # 1 - sigmoid(x)
            focal_pos = 0.25 * one_m_p * one_m_p * (relu_x - x + log_term)
            focal_neg = 0.75 * p * p * (relu_x + log_term)

            # ---- regression: -log(IoU(pred, target) + 0.01) on positives ----
            px = prop_ref[0, rows, :].astype(jnp.float32)
            py = prop_ref[1, rows, :].astype(jnp.float32)
            pw = prop_ref[2, rows, :].astype(jnp.float32)
            ph = prop_ref[3, rows, :].astype(jnp.float32)
            iw = jnp.maximum(jnp.minimum(px + pw, tx + tw) - jnp.maximum(px, tx), 0.0)
            ih = jnp.maximum(jnp.minimum(py + ph, ty + th) - jnp.maximum(py, ty), 0.0)
            inter2 = iw * ih
            iou2 = inter2 / (pw * ph + tw * th - inter2)
            per_anchor = -jnp.log(iou2 + 0.01)

            # where-select (not multiply) so NaNs from masked anchors are dropped
            return (acc_sp + jnp.where(pos, focal_pos, 0.0),
                    acc_sn + jnp.where(neg, focal_neg, 0.0),
                    acc_str + jnp.where(pos, per_anchor, 0.0),
                    acc_pc + jnp.where(pos, 1.0, 0.0),
                    acc_nc + jnp.where(neg, 1.0, 0.0))

        zacc = jnp.zeros((CS, LANE), jnp.float32)
        acc_sp, acc_sn, acc_str, acc_pc, acc_nc = jax.lax.fori_loop(
            0, n_chunks, chunk_body, (zacc, zacc, zacc, zacc, zacc))

        # lane-dense per-(b, ct) partial sums; reduced / normalized in JAX
        out_ref[0 * CS:1 * CS, :] = acc_sp
        out_ref[1 * CS:2 * CS, :] = acc_sn
        out_ref[2 * CS:3 * CS, :] = acc_str
        out_ref[3 * CS:4 * CS, :] = acc_pc
        out_ref[4 * CS:5 * CS, :] = acc_nc

    out = pl.pallas_call(
        kernel,
        out_shape=jax.ShapeDtypeStruct((B, NT, 5 * CS, LANE), jnp.float32),
        grid_spec=pltpu.PrefetchScalarGridSpec(
            num_scalar_prefetch=0,
            grid=(NT, B),     # ct outer, b inner -> anchor tile reused across b
            in_specs=[
                # ground truth: tiny, 1-D, SMEM-resident (copied once)
                pl.BlockSpec(memory_space=pltpu.MemorySpace.SMEM),
                pl.BlockSpec((4, None, S, LANE), lambda ct, b: (0, ct, 0, 0)),
                pl.BlockSpec((None, 5, None, S, LANE),
                             lambda ct, b: (b, 0, ct, 0, 0)),
            ],
            out_specs=pl.BlockSpec((None, None, 5 * CS, LANE),
                                   lambda ct, b: (b, ct, 0, 0)),
        ),
        compiler_params=pltpu.CompilerParams(
            dimension_semantics=("parallel", "parallel")),
    )(gt_flat, anc, prop)

    # ---- finalize in plain JAX (exact divides, batch mean) ----
    parts = out.reshape(B, NT, 5, CS, LANE).sum(axis=(1, 3, 4))   # (B, 5)
    sum_pos, sum_neg, str_sum = parts[:, 0], parts[:, 1], parts[:, 2]
    pos_cnt, neg_cnt = parts[:, 3], parts[:, 4]
    stc = (jnp.where(pos_cnt > 0, sum_pos / jnp.maximum(pos_cnt, 1.0), 0.0)
           + jnp.where(neg_cnt > 0, sum_neg / jnp.maximum(neg_cnt, 1.0), 0.0))
    str_loss = jnp.where(pos_cnt > 0, str_sum / jnp.maximum(pos_cnt, 1.0), 0.0)
    return jnp.sum(stc + str_loss) / jnp.float32(B)


def ainnoface_loss_ref(ss_proposal, anchors, ground_truth,
                       ss_low=0.4, ss_high=0.5):
    """Pure-JAX reference mirroring the PyTorch forward."""
    B = ss_proposal.shape[0]
    a = anchors.astype(jnp.float32)
    ax1, ay1 = a[:, 0], a[:, 1]
    ax2, ay2 = a[:, 0] + a[:, 2], a[:, 1] + a[:, 3]
    area_a = a[:, 2] * a[:, 3]
    total = jnp.float32(0.0)
    for i in range(B):
        g = ground_truth[i].astype(jnp.float32)
        gx1, gy1 = g[:, 0], g[:, 1]
        gx2, gy2 = g[:, 0] + g[:, 2], g[:, 1] + g[:, 3]
        area_g = g[:, 2] * g[:, 3]
        ix1 = jnp.maximum(ax1[:, None], gx1[None, :])
        iy1 = jnp.maximum(ay1[:, None], gy1[None, :])
        ix2 = jnp.minimum(ax2[:, None], gx2[None, :])
        iy2 = jnp.minimum(ay2[:, None], gy2[None, :])
        inter = jnp.maximum(ix2 - ix1, 0.0) * jnp.maximum(iy2 - iy1, 0.0)
        iou = inter / (area_a[:, None] + area_g[None, :] - inter)
        score = jnp.max(iou, axis=1)
        tgt = g[jnp.argmax(iou, axis=1)]

        pos = score >= ss_high
        neg = score < ss_low
        pc = jnp.sum(pos.astype(jnp.float32))
        nc = jnp.sum(neg.astype(jnp.float32))

        x = ss_proposal[i, :, 4].astype(jnp.float32)
        p = jax.nn.sigmoid(x)
        log_term = jnp.log1p(jnp.exp(-jnp.abs(x)))
        ce1 = jnp.maximum(x, 0.0) - x + log_term
        ce0 = jnp.maximum(x, 0.0) + log_term
        fpos = 0.25 * (1.0 - p) ** 2 * ce1
        fneg = 0.75 * p ** 2 * ce0
        stc = (jnp.where(pc > 0, jnp.sum(fpos * pos) / jnp.maximum(pc, 1.0), 0.0)
               + jnp.where(nc > 0, jnp.sum(fneg * neg) / jnp.maximum(nc, 1.0), 0.0))

        pb = ss_proposal[i, :, :4].astype(jnp.float32)
        px1, py1 = pb[:, 0], pb[:, 1]
        px2, py2 = pb[:, 0] + pb[:, 2], pb[:, 1] + pb[:, 3]
        tx1, ty1 = tgt[:, 0], tgt[:, 1]
        tx2, ty2 = tgt[:, 0] + tgt[:, 2], tgt[:, 1] + tgt[:, 3]
        iw = jnp.maximum(jnp.minimum(px2, tx2) - jnp.maximum(px1, tx1), 0.0)
        ih = jnp.maximum(jnp.minimum(py2, ty2) - jnp.maximum(py1, ty1), 0.0)
        inter2 = iw * ih
        iou2 = inter2 / (pb[:, 2] * pb[:, 3] + tgt[:, 2] * tgt[:, 3] - inter2)
        per = -jnp.log(iou2 + 0.01)
        strl = jnp.where(pc > 0,
                         jnp.sum(jnp.where(pos, per, 0.0)) / jnp.maximum(pc, 1.0),
                         0.0)
        total = total + stc + strl
    return total / B


if __name__ == "__main__":
    key = jax.random.PRNGKey(0)
    B, K = 2, 8
    C_FULL = 1800

    k1, k2, k3, k4, k5, k6, k7, k8 = jax.random.split(key, 8)

    # anchors (C_FULL, 4) in xywh with positive w, h
    anchor_xy = jax.random.uniform(k1, (C_FULL, 2), minval=0.0, maxval=10.0)
    anchor_wh = jax.random.uniform(k2, (C_FULL, 2), minval=1.0, maxval=3.0)
    anchors = jnp.concatenate([anchor_xy, anchor_wh], axis=1)

    # ground truth (B, K, 4): perturbed copies of early anchors -> some positives
    idx = jax.random.randint(k3, (B, K), 0, 200)
    gt = anchors[idx] + jax.random.uniform(k4, (B, K, 4), minval=-0.1, maxval=0.1)

    # second-stage proposals (B, C_FULL, 6): boxes near anchors, random logits
    prop_xy = anchors[None, :, :2] + jax.random.uniform(
        k5, (B, C_FULL, 2), minval=-0.2, maxval=0.2)
    prop_wh = anchors[None, :, 2:4] * jax.random.uniform(
        k6, (B, C_FULL, 2), minval=0.8, maxval=1.2)
    cls_logit = jax.random.normal(k7, (B, C_FULL, 1))
    extra = jax.random.normal(k8, (B, C_FULL, 1))
    ss_proposal = jnp.concatenate([prop_xy, prop_wh, cls_logit, extra], axis=2)

    def check(C, **kw):
        loss = jax.block_until_ready(
            ainnoface_loss_pallas(ss_proposal[:, :C], anchors[:C], gt, **kw))
        ref = jax.block_until_ready(
            ainnoface_loss_ref(ss_proposal[:, :C], anchors[:C], gt))
        assert jnp.isfinite(loss), f"non-finite loss (C={C}): {loss}"
        assert jnp.allclose(loss, ref, rtol=1e-3, atol=1e-3), (C, kw, loss, ref)

    check(256)                          # primary: single tile, padded anchors
    check(200)                          # C not a multiple of 128
    check(1800)                         # multi-chunk inner loop (n_chunks > 1)
    check(1800, max_c_tile=1024)        # multi-tile grid (NT > 1), anchor reuse
    print("KERNEL_OK")
</pallas_src>

<mosaic_0001>
module attributes {stable_mosaic.version = 11 : i64} {
  func.func @kernel(%arg0: i32, %arg1: i32, %arg2: memref<64xf32, #tpu.memory_space<smem>>, %arg3: memref<4x1x8x128xf32, #tpu.memory_space<vmem>>, %arg4: memref<1x5x1x8x128xf32, #tpu.memory_space<vmem>>, %arg5: memref<1x1x40x128xf32, #tpu.memory_space<vmem>>) attributes {dimension_semantics = [#tpu.dimension_semantics<parallel>, #tpu.dimension_semantics<parallel>], iteration_bounds = array<i64: 1, 2>, scalar_prefetch = 0 : i64, scratch_operands = 0 : i64, tpu.core_type = #tpu.core_type<tc>, window_params = [{transform_indices = @transform_0, window_bounds = array<i64: 64>}, {transform_indices = @transform_1, window_bounds = array<i64: 4, 1, 8, 128>}, {transform_indices = @transform_2, window_bounds = array<i64: 1, 5, 1, 8, 128>}, {transform_indices = @transform_3, window_bounds = array<i64: 1, 1, 40, 128>}]} {
    %0 = tpu.iota {dimensions = array<i32: 0>} : vector<8x128xi32>
    %1 = tpu.iota {dimensions = array<i32: 1>} : vector<8x128xi32>
    %c128_i32 = arith.constant 128 : i32
    %2 = vector.broadcast %c128_i32 : i32 to vector<8x128xi32>
    %3 = arith.muli %0, %2 : vector<8x128xi32>
    %4 = arith.addi %3, %1 : vector<8x128xi32>
    %cst = arith.constant 0.000000e+00 : f32
    %5 = vector.broadcast %cst : f32 to vector<8x128xf32>
    %c0_i32 = arith.constant 0 : i32
    %c8_i32 = arith.constant 8 : i32
    %6 = arith.muli %c0_i32, %c8_i32 : i32
    %7 = tpu.assume_multiple %6, 8 : i32
    %c0 = arith.constant 0 : index
    %c0_0 = arith.constant 0 : index
    %8 = arith.index_cast %7 : i32 to index
    %c0_1 = arith.constant 0 : index
    %9 = vector.load %arg3[%c0, %c0_0, %8, %c0_1] : memref<4x1x8x128xf32, #tpu.memory_space<vmem>>, vector<1x1x8x128xf32>
    %10 = vector.shape_cast %9 : vector<1x1x8x128xf32> to vector<8x128xf32>
    %c1 = arith.constant 1 : index
    %c0_2 = arith.constant 0 : index
    %11 = arith.index_cast %7 : i32 to index
    %c0_3 = arith.constant 0 : index
    %12 = vector.load %arg3[%c1, %c0_2, %11, %c0_3] : memref<4x1x8x128xf32, #tpu.memory_space<vmem>>, vector<1x1x8x128xf32>
    %13 = vector.shape_cast %12 : vector<1x1x8x128xf32> to vector<8x128xf32>
    %c2 = arith.constant 2 : index
    %c0_4 = arith.constant 0 : index
    %14 = arith.index_cast %7 : i32 to index
    %c0_5 = arith.constant 0 : index
    %15 = vector.load %arg3[%c2, %c0_4, %14, %c0_5] : memref<4x1x8x128xf32, #tpu.memory_space<vmem>>, vector<1x1x8x128xf32>
    %16 = vector.shape_cast %15 : vector<1x1x8x128xf32> to vector<8x128xf32>
    %c3 = arith.constant 3 : index
    %c0_6 = arith.constant 0 : index
    %17 = arith.index_cast %7 : i32 to index
    %c0_7 = arith.constant 0 : index
    %18 = vector.load %arg3[%c3, %c0_6, %17, %c0_7] : memref<4x1x8x128xf32, #tpu.memory_space<vmem>>, vector<1x1x8x128xf32>
    %19 = vector.shape_cast %18 : vector<1x1x8x128xf32> to vector<8x128xf32>
    %20 = arith.addf %10, %16 : vector<8x128xf32>
    %21 = arith.addf %13, %19 : vector<8x128xf32>
    %22 = arith.mulf %16, %19 : vector<8x128xf32>
    %cst_8 = arith.constant 0.000000e+00 : f32
    %23 = vector.broadcast %cst_8 : f32 to vector<8x128xf32>
    %cst_9 = arith.constant -1.000000e+00 : f32
    %24 = vector.broadcast %cst_9 : f32 to vector<8x128xf32>
    %cst_10 = arith.constant 1.000000e+00 : f32
    %25 = vector.broadcast %cst_10 : f32 to vector<8x128xf32>
    %c0_i32_11 = arith.constant 0 : i32
    %c32_i32 = arith.constant 32 : i32
    %26 = arith.muli %arg1, %c32_i32 : i32
    %c4_i32 = arith.constant 4 : i32
    %27 = arith.muli %c4_i32, %c0_i32_11 : i32
    %28 = arith.addi %26, %27 : i32
    %c0_i32_12 = arith.constant 0 : i32
    %29 = arith.addi %28, %c0_i32_12 : i32
    %30 = arith.index_cast %29 : i32 to index
    %31 = memref.load %arg2[%30] : memref<64xf32, #tpu.memory_space<smem>>
    %c1_i32 = arith.constant 1 : i32
    %32 = arith.addi %28, %c1_i32 : i32
    %33 = arith.index_cast %32 : i32 to index
    %34 = memref.load %arg2[%33] : memref<64xf32, #tpu.memory_space<smem>>
    %c2_i32 = arith.constant 2 : i32
    %35 = arith.addi %28, %c2_i32 : i32
    %36 = arith.index_cast %35 : i32 to index
    %37 = memref.load %arg2[%36] : memref<64xf32, #tpu.memory_space<smem>>
    %c3_i32 = arith.constant 3 : i32
    %38 = arith.addi %28, %c3_i32 : i32
    %39 = arith.index_cast %38 : i32 to index
    %40 = memref.load %arg2[%39] : memref<64xf32, #tpu.memory_space<smem>>
    %41 = vector.broadcast %31 : f32 to vector<8x128xf32>
    %42 = arith.maximumf %10, %41 : vector<8x128xf32>
    %43 = vector.broadcast %34 : f32 to vector<8x128xf32>
    %44 = arith.maximumf %13, %43 : vector<8x128xf32>
    %45 = arith.addf %31, %37 : f32
    %46 = vector.broadcast %45 : f32 to vector<8x128xf32>
    %47 = arith.minimumf %20, %46 : vector<8x128xf32>
    %48 = arith.addf %34, %40 : f32
    %49 = vector.broadcast %48 : f32 to vector<8x128xf32>
    %50 = arith.minimumf %21, %49 : vector<8x128xf32>
    %51 = arith.subf %47, %42 : vector<8x128xf32>
    %cst_13 = arith.constant 0.000000e+00 : f32
    %52 = vector.broadcast %cst_13 : f32 to vector<8x128xf32>
    %53 = arith.maximumf %51, %52 : vector<8x128xf32>
    %54 = arith.subf %50, %44 : vector<8x128xf32>
    %cst_14 = arith.constant 0.000000e+00 : f32
    %55 = vector.broadcast %cst_14 : f32 to vector<8x128xf32>
    %56 = arith.maximumf %54, %55 : vector<8x128xf32>
    %57 = arith.mulf %53, %56 : vector<8x128xf32>
    %58 = arith.mulf %37, %40 : f32
    %59 = vector.broadcast %58 : f32 to vector<8x128xf32>
    %60 = arith.addf %22, %59 : vector<8x128xf32>
    %61 = arith.subf %60, %57 : vector<8x128xf32>
    %62 = arith.mulf %57, %25 : vector<8x128xf32>
    %63 = arith.mulf %24, %61 : vector<8x128xf32>
    %64 = arith.cmpf ogt, %62, %63 : vector<8x128xf32>
    %65 = arith.select %64, %57, %24 : vector<8x128xi1>, vector<8x128xf32>
    %66 = arith.select %64, %61, %25 : vector<8x128xi1>, vector<8x128xf32>
    %67 = vector.broadcast %31 : f32 to vector<8x128xf32>
    %68 = arith.select %64, %67, %23 : vector<8x128xi1>, vector<8x128xf32>
    %69 = vector.broadcast %34 : f32 to vector<8x128xf32>
    %70 = arith.select %64, %69, %23 : vector<8x128xi1>, vector<8x128xf32>
    %71 = vector.broadcast %37 : f32 to vector<8x128xf32>
    %72 = arith.select %64, %71, %23 : vector<8x128xi1>, vector<8x128xf32>
    %73 = vector.broadcast %40 : f32 to vector<8x128xf32>
    %74 = arith.select %64, %73, %23 : vector<8x128xi1>, vector<8x128xf32>
    %c1_i32_15 = arith.constant 1 : i32
    %c32_i32_16 = arith.constant 32 : i32
    %75 = arith.muli %arg1, %c32_i32_16 : i32
    %c4_i32_17 = arith.constant 4 : i32
    %76 = arith.muli %c4_i32_17, %c1_i32_15 : i32
    %77 = arith.addi %75, %76 : i32
    %c0_i32_18 = arith.constant 0 : i32
    %78 = arith.addi %77, %c0_i32_18 : i32
    %79 = arith.index_cast %78 : i32 to index
    %80 = memref.load %arg2[%79] : memref<64xf32, #tpu.memory_space<smem>>
    %c1_i32_19 = arith.constant 1 : i32
    %81 = arith.addi %77, %c1_i32_19 : i32
    %82 = arith.index_cast %81 : i32 to index
    %83 = memref.load %arg2[%82] : memref<64xf32, #tpu.memory_space<smem>>
    %c2_i32_20 = arith.constant 2 : i32
    %84 = arith.addi %77, %c2_i32_20 : i32
    %85 = arith.index_cast %84 : i32 to index
    %86 = memref.load %arg2[%85] : memref<64xf32, #tpu.memory_space<smem>>
    %c3_i32_21 = arith.constant 3 : i32
    %87 = arith.addi %77, %c3_i32_21 : i32
    %88 = arith.index_cast %87 : i32 to index
    %89 = memref.load %arg2[%88] : memref<64xf32, #tpu.memory_space<smem>>
    %90 = vector.broadcast %80 : f32 to vector<8x128xf32>
    %91 = arith.maximumf %10, %90 : vector<8x128xf32>
    %92 = vector.broadcast %83 : f32 to vector<8x128xf32>
    %93 = arith.maximumf %13, %92 : vector<8x128xf32>
    %94 = arith.addf %80, %86 : f32
    %95 = vector.broadcast %94 : f32 to vector<8x128xf32>
    %96 = arith.minimumf %20, %95 : vector<8x128xf32>
    %97 = arith.addf %83, %89 : f32
    %98 = vector.broadcast %97 : f32 to vector<8x128xf32>
    %99 = arith.minimumf %21, %98 : vector<8x128xf32>
    %100 = arith.subf %96, %91 : vector<8x128xf32>
    %cst_22 = arith.constant 0.000000e+00 : f32
    %101 = vector.broadcast %cst_22 : f32 to vector<8x128xf32>
    %102 = arith.maximumf %100, %101 : vector<8x128xf32>
    %103 = arith.subf %99, %93 : vector<8x128xf32>
    %cst_23 = arith.constant 0.000000e+00 : f32
    %104 = vector.broadcast %cst_23 : f32 to vector<8x128xf32>
    %105 = arith.maximumf %103, %104 : vector<8x128xf32>
    %106 = arith.mulf %102, %105 : vector<8x128xf32>
    %107 = arith.mulf %86, %89 : f32
    %108 = vector.broadcast %107 : f32 to vector<8x128xf32>
    %109 = arith.addf %22, %108 : vector<8x128xf32>
    %110 = arith.subf %109, %106 : vector<8x128xf32>
    %111 = arith.mulf %106, %66 : vector<8x128xf32>
    %112 = arith.mulf %65, %110 : vector<8x128xf32>
    %113 = arith.cmpf ogt, %111, %112 : vector<8x128xf32>
    %114 = arith.select %113, %106, %65 : vector<8x128xi1>, vector<8x128xf32>
    %115 = arith.select %113, %110, %66 : vector<8x128xi1>, vector<8x128xf32>
    %116 = vector.broadcast %80 : f32 to vector<8x128xf32>
    %117 = arith.select %113, %116, %68 : vector<8x128xi1>, vector<8x128xf32>
    %118 = vector.broadcast %83 : f32 to vector<8x128xf32>
    %119 = arith.select %113, %118, %70 : vector<8x128xi1>, vector<8x128xf32>
    %120 = vector.broadcast %86 : f32 to vector<8x128xf32>
    %121 = arith.select %113, %120, %72 : vector<8x128xi1>, vector<8x128xf32>
    %122 = vector.broadcast %89 : f32 to vector<8x128xf32>
    %123 = arith.select %113, %122, %74 : vector<8x128xi1>, vector<8x128xf32>
    %c2_i32_24 = arith.constant 2 : i32
    %c32_i32_25 = arith.constant 32 : i32
    %124 = arith.muli %arg1, %c32_i32_25 : i32
    %c4_i32_26 = arith.constant 4 : i32
    %125 = arith.muli %c4_i32_26, %c2_i32_24 : i32
    %126 = arith.addi %124, %125 : i32
    %c0_i32_27 = arith.constant 0 : i32
    %127 = arith.addi %126, %c0_i32_27 : i32
    %128 = arith.index_cast %127 : i32 to index
    %129 = memref.load %arg2[%128] : memref<64xf32, #tpu.memory_space<smem>>
    %c1_i32_28 = arith.constant 1 : i32
    %130 = arith.addi %126, %c1_i32_28 : i32
    %131 = arith.index_cast %130 : i32 to index
    %132 = memref.load %arg2[%131] : memref<64xf32, #tpu.memory_space<smem>>
    %c2_i32_29 = arith.constant 2 : i32
    %133 = arith.addi %126, %c2_i32_29 : i32
    %134 = arith.index_cast %133 : i32 to index
    %135 = memref.load %arg2[%134] : memref<64xf32, #tpu.memory_space<smem>>
    %c3_i32_30 = arith.constant 3 : i32
    %136 = arith.addi %126, %c3_i32_30 : i32
    %137 = arith.index_cast %136 : i32 to index
    %138 = memref.load %arg2[%137] : memref<64xf32, #tpu.memory_space<smem>>
    %139 = vector.broadcast %129 : f32 to vector<8x128xf32>
    %140 = arith.maximumf %10, %139 : vector<8x128xf32>
    %141 = vector.broadcast %132 : f32 to vector<8x128xf32>
    %142 = arith.maximumf %13, %141 : vector<8x128xf32>
    %143 = arith.addf %129, %135 : f32
    %144 = vector.broadcast %143 : f32 to vector<8x128xf32>
    %145 = arith.minimumf %20, %144 : vector<8x128xf32>
    %146 = arith.addf %132, %138 : f32
    %147 = vector.broadcast %146 : f32 to vector<8x128xf32>
    %148 = arith.minimumf %21, %147 : vector<8x128xf32>
    %149 = arith.subf %145, %140 : vector<8x128xf32>
    %cst_31 = arith.constant 0.000000e+00 : f32
    %150 = vector.broadcast %cst_31 : f32 to vector<8x128xf32>
    %151 = arith.maximumf %149, %150 : vector<8x128xf32>
    %152 = arith.subf %148, %142 : vector<8x128xf32>
    %cst_32 = arith.constant 0.000000e+00 : f32
    %153 = vector.broadcast %cst_32 : f32 to vector<8x128xf32>
    %154 = arith.maximumf %152, %153 : vector<8x128xf32>
    %155 = arith.mulf %151, %154 : vector<8x128xf32>
    %156 = arith.mulf %135, %138 : f32
    %157 = vector.broadcast %156 : f32 to vector<8x128xf32>
    %158 = arith.addf %22, %157 : vector<8x128xf32>
    %159 = arith.subf %158, %155 : vector<8x128xf32>
    %160 = arith.mulf %155, %115 : vector<8x128xf32>
    %161 = arith.mulf %114, %159 : vector<8x128xf32>
    %162 = arith.cmpf ogt, %160, %161 : vector<8x128xf32>
    %163 = arith.select %162, %155, %114 : vector<8x128xi1>, vector<8x128xf32>
    %164 = arith.select %162, %159, %115 : vector<8x128xi1>, vector<8x128xf32>
    %165 = vector.broadcast %129 : f32 to vector<8x128xf32>
    %166 = arith.select %162, %165, %117 : vector<8x128xi1>, vector<8x128xf32>
    %167 = vector.broadcast %132 : f32 to vector<8x128xf32>
    %168 = arith.select %162, %167, %119 : vector<8x128xi1>, vector<8x128xf32>
    %169 = vector.broadcast %135 : f32 to vector<8x128xf32>
    %170 = arith.select %162, %169, %121 : vector<8x128xi1>, vector<8x128xf32>
    %171 = vector.broadcast %138 : f32 to vector<8x128xf32>
    %172 = arith.select %162, %171, %123 : vector<8x128xi1>, vector<8x128xf32>
    %c3_i32_33 = arith.constant 3 : i32
    %c32_i32_34 = arith.constant 32 : i32
    %173 = arith.muli %arg1, %c32_i32_34 : i32
    %c4_i32_35 = arith.constant 4 : i32
    %174 = arith.muli %c4_i32_35, %c3_i32_33 : i32
    %175 = arith.addi %173, %174 : i32
    %c0_i32_36 = arith.constant 0 : i32
    %176 = arith.addi %175, %c0_i32_36 : i32
    %177 = arith.index_cast %176 : i32 to index
    %178 = memref.load %arg2[%177] : memref<64xf32, #tpu.memory_space<smem>>
    %c1_i32_37 = arith.constant 1 : i32
    %179 = arith.addi %175, %c1_i32_37 : i32
    %180 = arith.index_cast %179 : i32 to index
    %181 = memref.load %arg2[%180] : memref<64xf32, #tpu.memory_space<smem>>
    %c2_i32_38 = arith.constant 2 : i32
    %182 = arith.addi %175, %c2_i32_38 : i32
    %183 = arith.index_cast %182 : i32 to index
    %184 = memref.load %arg2[%183] : memref<64xf32, #tpu.memory_space<smem>>
    %c3_i32_39 = arith.constant 3 : i32
    %185 = arith.addi %175, %c3_i32_39 : i32
    %186 = arith.index_cast %185 : i32 to index
    %187 = memref.load %arg2[%186] : memref<64xf32, #tpu.memory_space<smem>>
    %188 = vector.broadcast %178 : f32 to vector<8x128xf32>
    %189 = arith.maximumf %10, %188 : vector<8x128xf32>
    %190 = vector.broadcast %181 : f32 to vector<8x128xf32>
    %191 = arith.maximumf %13, %190 : vector<8x128xf32>
    %192 = arith.addf %178, %184 : f32
    %193 = vector.broadcast %192 : f32 to vector<8x128xf32>
    %194 = arith.minimumf %20, %193 : vector<8x128xf32>
    %195 = arith.addf %181, %187 : f32
    %196 = vector.broadcast %195 : f32 to vector<8x128xf32>
    %197 = arith.minimumf %21, %196 : vector<8x128xf32>
    %198 = arith.subf %194, %189 : vector<8x128xf32>
    %cst_40 = arith.constant 0.000000e+00 : f32
    %199 = vector.broadcast %cst_40 : f32 to vector<8x128xf32>
    %200 = arith.maximumf %198, %199 : vector<8x128xf32>
    %201 = arith.subf %197, %191 : vector<8x128xf32>
    %cst_41 = arith.constant 0.000000e+00 : f32
    %202 = vector.broadcast %cst_41 : f32 to vector<8x128xf32>
    %203 = arith.maximumf %201, %202 : vector<8x128xf32>
    %204 = arith.mulf %200, %203 : vector<8x128xf32>
    %205 = arith.mulf %184, %187 : f32
    %206 = vector.broadcast %205 : f32 to vector<8x128xf32>
    %207 = arith.addf %22, %206 : vector<8x128xf32>
    %208 = arith.subf %207, %204 : vector<8x128xf32>
    %209 = arith.mulf %204, %164 : vector<8x128xf32>
    %210 = arith.mulf %163, %208 : vector<8x128xf32>
    %211 = arith.cmpf ogt, %209, %210 : vector<8x128xf32>
    %212 = arith.select %211, %204, %163 : vector<8x128xi1>, vector<8x128xf32>
    %213 = arith.select %211, %208, %164 : vector<8x128xi1>, vector<8x128xf32>
    %214 = vector.broadcast %178 : f32 to vector<8x128xf32>
    %215 = arith.select %211, %214, %166 : vector<8x128xi1>, vector<8x128xf32>
    %216 = vector.broadcast %181 : f32 to vector<8x128xf32>
    %217 = arith.select %211, %216, %168 : vector<8x128xi1>, vector<8x128xf32>
    %218 = vector.broadcast %184 : f32 to vector<8x128xf32>
    %219 = arith.select %211, %218, %170 : vector<8x128xi1>, vector<8x128xf32>
    %220 = vector.broadcast %187 : f32 to vector<8x128xf32>
    %221 = arith.select %211, %220, %172 : vector<8x128xi1>, vector<8x128xf32>
    %c4_i32_42 = arith.constant 4 : i32
    %c32_i32_43 = arith.constant 32 : i32
    %222 = arith.muli %arg1, %c32_i32_43 : i32
    %c4_i32_44 = arith.constant 4 : i32
    %223 = arith.muli %c4_i32_44, %c4_i32_42 : i32
    %224 = arith.addi %222, %223 : i32
    %c0_i32_45 = arith.constant 0 : i32
    %225 = arith.addi %224, %c0_i32_45 : i32
    %226 = arith.index_cast %225 : i32 to index
    %227 = memref.load %arg2[%226] : memref<64xf32, #tpu.memory_space<smem>>
    %c1_i32_46 = arith.constant 1 : i32
    %228 = arith.addi %224, %c1_i32_46 : i32
    %229 = arith.index_cast %228 : i32 to index
    %230 = memref.load %arg2[%229] : memref<64xf32, #tpu.memory_space<smem>>
    %c2_i32_47 = arith.constant 2 : i32
    %231 = arith.addi %224, %c2_i32_47 : i32
    %232 = arith.index_cast %231 : i32 to index
    %233 = memref.load %arg2[%232] : memref<64xf32, #tpu.memory_space<smem>>
    %c3_i32_48 = arith.constant 3 : i32
    %234 = arith.addi %224, %c3_i32_48 : i32
    %235 = arith.index_cast %234 : i32 to index
    %236 = memref.load %arg2[%235] : memref<64xf32, #tpu.memory_space<smem>>
    %237 = vector.broadcast %227 : f32 to vector<8x128xf32>
    %238 = arith.maximumf %10, %237 : vector<8x128xf32>
    %239 = vector.broadcast %230 : f32 to vector<8x128xf32>
    %240 = arith.maximumf %13, %239 : vector<8x128xf32>
    %241 = arith.addf %227, %233 : f32
    %242 = vector.broadcast %241 : f32 to vector<8x128xf32>
    %243 = arith.minimumf %20, %242 : vector<8x128xf32>
    %244 = arith.addf %230, %236 : f32
    %245 = vector.broadcast %244 : f32 to vector<8x128xf32>
    %246 = arith.minimumf %21, %245 : vector<8x128xf32>
    %247 = arith.subf %243, %238 : vector<8x128xf32>
    %cst_49 = arith.constant 0.000000e+00 : f32
    %248 = vector.broadcast %cst_49 : f32 to vector<8x128xf32>
    %249 = arith.maximumf %247, %248 : vector<8x128xf32>
    %250 = arith.subf %246, %240 : vector<8x128xf32>
    %cst_50 = arith.constant 0.000000e+00 : f32
    %251 = vector.broadcast %cst_50 : f32 to vector<8x128xf32>
    %252 = arith.maximumf %250, %251 : vector<8x128xf32>
    %253 = arith.mulf %249, %252 : vector<8x128xf32>
    %254 = arith.mulf %233, %236 : f32
    %255 = vector.broadcast %254 : f32 to vector<8x128xf32>
    %256 = arith.addf %22, %255 : vector<8x128xf32>
    %257 = arith.subf %256, %253 : vector<8x128xf32>
    %258 = arith.mulf %253, %213 : vector<8x128xf32>
    %259 = arith.mulf %212, %257 : vector<8x128xf32>
    %260 = arith.cmpf ogt, %258, %259 : vector<8x128xf32>
    %261 = arith.select %260, %253, %212 : vector<8x128xi1>, vector<8x128xf32>
    %262 = arith.select %260, %257, %213 : vector<8x128xi1>, vector<8x128xf32>
    %263 = vector.broadcast %227 : f32 to vector<8x128xf32>
    %264 = arith.select %260, %263, %215 : vector<8x128xi1>, vector<8x128xf32>
    %265 = vector.broadcast %230 : f32 to vector<8x128xf32>
    %266 = arith.select %260, %265, %217 : vector<8x128xi1>, vector<8x128xf32>
    %267 = vector.broadcast %233 : f32 to vector<8x128xf32>
    %268 = arith.select %260, %267, %219 : vector<8x128xi1>, vector<8x128xf32>
    %269 = vector.broadcast %236 : f32 to vector<8x128xf32>
    %270 = arith.select %260, %269, %221 : vector<8x128xi1>, vector<8x128xf32>
    %c5_i32 = arith.constant 5 : i32
    %c32_i32_51 = arith.constant 32 : i32
    %271 = arith.muli %arg1, %c32_i32_51 : i32
    %c4_i32_52 = arith.constant 4 : i32
    %272 = arith.muli %c4_i32_52, %c5_i32 : i32
    %273 = arith.addi %271, %272 : i32
    %c0_i32_53 = arith.constant 0 : i32
    %274 = arith.addi %273, %c0_i32_53 : i32
    %275 = arith.index_cast %274 : i32 to index
    %276 = memref.load %arg2[%275] : memref<64xf32, #tpu.memory_space<smem>>
    %c1_i32_54 = arith.constant 1 : i32
    %277 = arith.addi %273, %c1_i32_54 : i32
    %278 = arith.index_cast %277 : i32 to index
    %279 = memref.load %arg2[%278] : memref<64xf32, #tpu.memory_space<smem>>
    %c2_i32_55 = arith.constant 2 : i32
    %280 = arith.addi %273, %c2_i32_55 : i32
    %281 = arith.index_cast %280 : i32 to index
    %282 = memref.load %arg2[%281] : memref<64xf32, #tpu.memory_space<smem>>
    %c3_i32_56 = arith.constant 3 : i32
    %283 = arith.addi %273, %c3_i32_56 : i32
    %284 = arith.index_cast %283 : i32 to index
    %285 = memref.load %arg2[%284] : memref<64xf32, #tpu.memory_space<smem>>
    %286 = vector.broadcast %276 : f32 to vector<8x128xf32>
    %287 = arith.maximumf %10, %286 : vector<8x128xf32>
    %288 = vector.broadcast %279 : f32 to vector<8x128xf32>
    %289 = arith.maximumf %13, %288 : vector<8x128xf32>
    %290 = arith.addf %276, %282 : f32
    %291 = vector.broadcast %290 : f32 to vector<8x128xf32>
    %292 = arith.minimumf %20, %291 : vector<8x128xf32>
    %293 = arith.addf %279, %285 : f32
    %294 = vector.broadcast %293 : f32 to vector<8x128xf32>
    %295 = arith.minimumf %21, %294 : vector<8x128xf32>
    %296 = arith.subf %292, %287 : vector<8x128xf32>
    %cst_57 = arith.constant 0.000000e+00 : f32
    %297 = vector.broadcast %cst_57 : f32 to vector<8x128xf32>
    %298 = arith.maximumf %296, %297 : vector<8x128xf32>
    %299 = arith.subf %295, %289 : vector<8x128xf32>
    %cst_58 = arith.constant 0.000000e+00 : f32
    %300 = vector.broadcast %cst_58 : f32 to vector<8x128xf32>
    %301 = arith.maximumf %299, %300 : vector<8x128xf32>
    %302 = arith.mulf %298, %301 : vector<8x128xf32>
    %303 = arith.mulf %282, %285 : f32
    %304 = vector.broadcast %303 : f32 to vector<8x128xf32>
    %305 = arith.addf %22, %304 : vector<8x128xf32>
    %306 = arith.subf %305, %302 : vector<8x128xf32>
    %307 = arith.mulf %302, %262 : vector<8x128xf32>
    %308 = arith.mulf %261, %306 : vector<8x128xf32>
    %309 = arith.cmpf ogt, %307, %308 : vector<8x128xf32>
    %310 = arith.select %309, %302, %261 : vector<8x128xi1>, vector<8x128xf32>
    %311 = arith.select %309, %306, %262 : vector<8x128xi1>, vector<8x128xf32>
    %312 = vector.broadcast %276 : f32 to vector<8x128xf32>
    %313 = arith.select %309, %312, %264 : vector<8x128xi1>, vector<8x128xf32>
    %314 = vector.broadcast %279 : f32 to vector<8x128xf32>
    %315 = arith.select %309, %314, %266 : vector<8x128xi1>, vector<8x128xf32>
    %316 = vector.broadcast %282 : f32 to vector<8x128xf32>
    %317 = arith.select %309, %316, %268 : vector<8x128xi1>, vector<8x128xf32>
    %318 = vector.broadcast %285 : f32 to vector<8x128xf32>
    %319 = arith.select %309, %318, %270 : vector<8x128xi1>, vector<8x128xf32>
    %c6_i32 = arith.constant 6 : i32
    %c32_i32_59 = arith.constant 32 : i32
    %320 = arith.muli %arg1, %c32_i32_59 : i32
    %c4_i32_60 = arith.constant 4 : i32
    %321 = arith.muli %c4_i32_60, %c6_i32 : i32
    %322 = arith.addi %320, %321 : i32
    %c0_i32_61 = arith.constant 0 : i32
    %323 = arith.addi %322, %c0_i32_61 : i32
    %324 = arith.index_cast %323 : i32 to index
    %325 = memref.load %arg2[%324] : memref<64xf32, #tpu.memory_space<smem>>
    %c1_i32_62 = arith.constant 1 : i32
    %326 = arith.addi %322, %c1_i32_62 : i32
    %327 = arith.index_cast %326 : i32 to index
    %328 = memref.load %arg2[%327] : memref<64xf32, #tpu.memory_space<smem>>
    %c2_i32_63 = arith.constant 2 : i32
    %329 = arith.addi %322, %c2_i32_63 : i32
    %330 = arith.index_cast %329 : i32 to index
    %331 = memref.load %arg2[%330] : memref<64xf32, #tpu.memory_space<smem>>
    %c3_i32_64 = arith.constant 3 : i32
    %332 = arith.addi %322, %c3_i32_64 : i32
    %333 = arith.index_cast %332 : i32 to index
    %334 = memref.load %arg2[%333] : memref<64xf32, #tpu.memory_space<smem>>
    %335 = vector.broadcast %325 : f32 to vector<8x128xf32>
    %336 = arith.maximumf %10, %335 : vector<8x128xf32>
    %337 = vector.broadcast %328 : f32 to vector<8x128xf32>
    %338 = arith.maximumf %13, %337 : vector<8x128xf32>
    %339 = arith.addf %325, %331 : f32
    %340 = vector.broadcast %339 : f32 to vector<8x128xf32>
    %341 = arith.minimumf %20, %340 : vector<8x128xf32>
    %342 = arith.addf %328, %334 : f32
    %343 = vector.broadcast %342 : f32 to vector<8x128xf32>
    %344 = arith.minimumf %21, %343 : vector<8x128xf32>
    %345 = arith.subf %341, %336 : vector<8x128xf32>
    %cst_65 = arith.constant 0.000000e+00 : f32
    %346 = vector.broadcast %cst_65 : f32 to vector<8x128xf32>
    %347 = arith.maximumf %345, %346 : vector<8x128xf32>
    %348 = arith.subf %344, %338 : vector<8x128xf32>
    %cst_66 = arith.constant 0.000000e+00 : f32
    %349 = vector.broadcast %cst_66 : f32 to vector<8x128xf32>
    %350 = arith.maximumf %348, %349 : vector<8x128xf32>
    %351 = arith.mulf %347, %350 : vector<8x128xf32>
    %352 = arith.mulf %331, %334 : f32
    %353 = vector.broadcast %352 : f32 to vector<8x128xf32>
    %354 = arith.addf %22, %353 : vector<8x128xf32>
    %355 = arith.subf %354, %351 : vector<8x128xf32>
    %356 = arith.mulf %351, %311 : vector<8x128xf32>
    %357 = arith.mulf %310, %355 : vector<8x128xf32>
    %358 = arith.cmpf ogt, %356, %357 : vector<8x128xf32>
    %359 = arith.select %358, %351, %310 : vector<8x128xi1>, vector<8x128xf32>
    %360 = arith.select %358, %355, %311 : vector<8x128xi1>, vector<8x128xf32>
    %361 = vector.broadcast %325 : f32 to vector<8x128xf32>
    %362 = arith.select %358, %361, %313 : vector<8x128xi1>, vector<8x128xf32>
    %363 = vector.broadcast %328 : f32 to vector<8x128xf32>
    %364 = arith.select %358, %363, %315 : vector<8x128xi1>, vector<8x128xf32>
    %365 = vector.broadcast %331 : f32 to vector<8x128xf32>
    %366 = arith.select %358, %365, %317 : vector<8x128xi1>, vector<8x128xf32>
    %367 = vector.broadcast %334 : f32 to vector<8x128xf32>
    %368 = arith.select %358, %367, %319 : vector<8x128xi1>, vector<8x128xf32>
    %c7_i32 = arith.constant 7 : i32
    %c32_i32_67 = arith.constant 32 : i32
    %369 = arith.muli %arg1, %c32_i32_67 : i32
    %c4_i32_68 = arith.constant 4 : i32
    %370 = arith.muli %c4_i32_68, %c7_i32 : i32
    %371 = arith.addi %369, %370 : i32
    %c0_i32_69 = arith.constant 0 : i32
    %372 = arith.addi %371, %c0_i32_69 : i32
    %373 = arith.index_cast %372 : i32 to index
    %374 = memref.load %arg2[%373] : memref<64xf32, #tpu.memory_space<smem>>
    %c1_i32_70 = arith.constant 1 : i32
    %375 = arith.addi %371, %c1_i32_70 : i32
    %376 = arith.index_cast %375 : i32 to index
    %377 = memref.load %arg2[%376] : memref<64xf32, #tpu.memory_space<smem>>
    %c2_i32_71 = arith.constant 2 : i32
    %378 = arith.addi %371, %c2_i32_71 : i32
    %379 = arith.index_cast %378 : i32 to index
    %380 = memref.load %arg2[%379] : memref<64xf32, #tpu.memory_space<smem>>
    %c3_i32_72 = arith.constant 3 : i32
    %381 = arith.addi %371, %c3_i32_72 : i32
    %382 = arith.index_cast %381 : i32 to index
    %383 = memref.load %arg2[%382] : memref<64xf32, #tpu.memory_space<smem>>
    %384 = vector.broadcast %374 : f32 to vector<8x128xf32>
    %385 = arith.maximumf %10, %384 : vector<8x128xf32>
    %386 = vector.broadcast %377 : f32 to vector<8x128xf32>
    %387 = arith.maximumf %13, %386 : vector<8x128xf32>
    %388 = arith.addf %374, %380 : f32
    %389 = vector.broadcast %388 : f32 to vector<8x128xf32>
    %390 = arith.minimumf %20, %389 : vector<8x128xf32>
    %391 = arith.addf %377, %383 : f32
    %392 = vector.broadcast %391 : f32 to vector<8x128xf32>
    %393 = arith.minimumf %21, %392 : vector<8x128xf32>
    %394 = arith.subf %390, %385 : vector<8x128xf32>
    %cst_73 = arith.constant 0.000000e+00 : f32
    %395 = vector.broadcast %cst_73 : f32 to vector<8x128xf32>
    %396 = arith.maximumf %394, %395 : vector<8x128xf32>
    %397 = arith.subf %393, %387 : vector<8x128xf32>
    %cst_74 = arith.constant 0.000000e+00 : f32
    %398 = vector.broadcast %cst_74 : f32 to vector<8x128xf32>
    %399 = arith.maximumf %397, %398 : vector<8x128xf32>
    %400 = arith.mulf %396, %399 : vector<8x128xf32>
    %401 = arith.mulf %380, %383 : f32
    %402 = vector.broadcast %401 : f32 to vector<8x128xf32>
    %403 = arith.addf %22, %402 : vector<8x128xf32>
    %404 = arith.subf %403, %400 : vector<8x128xf32>
    %405 = arith.mulf %400, %360 : vector<8x128xf32>
    %406 = arith.mulf %359, %404 : vector<8x128xf32>
    %407 = arith.cmpf ogt, %405, %406 : vector<8x128xf32>
    %408 = arith.select %407, %400, %359 : vector<8x128xi1>, vector<8x128xf32>
    %409 = arith.select %407, %404, %360 : vector<8x128xi1>, vector<8x128xf32>
    %410 = vector.broadcast %374 : f32 to vector<8x128xf32>
    %411 = arith.select %407, %410, %362 : vector<8x128xi1>, vector<8x128xf32>
    %412 = vector.broadcast %377 : f32 to vector<8x128xf32>
    %413 = arith.select %407, %412, %364 : vector<8x128xi1>, vector<8x128xf32>
    %414 = vector.broadcast %380 : f32 to vector<8x128xf32>
    %415 = arith.select %407, %414, %366 : vector<8x128xi1>, vector<8x128xf32>
    %416 = vector.broadcast %383 : f32 to vector<8x128xf32>
    %417 = arith.select %407, %416, %368 : vector<8x128xi1>, vector<8x128xf32>
    %c8_i32_75 = arith.constant 8 : i32
    %418 = arith.divf %408, %409 : vector<8x128xf32>
    %cst_76 = arith.constant 5.000000e-01 : f32
    %419 = vector.broadcast %cst_76 : f32 to vector<8x128xf32>
    %420 = arith.cmpf oge, %418, %419 : vector<8x128xf32>
    %cst_77 = arith.constant 4.000000e-01 : f32
    %421 = vector.broadcast %cst_77 : f32 to vector<8x128xf32>
    %422 = arith.cmpf olt, %418, %421 : vector<8x128xf32>
    %c1024_i32 = arith.constant 1024 : i32
    %423 = arith.muli %arg0, %c1024_i32 : i32
    %c128_i32_78 = arith.constant 128 : i32
    %424 = arith.muli %7, %c128_i32_78 : i32
    %425 = arith.addi %423, %424 : i32
    %426 = vector.broadcast %425 : i32 to vector<8x128xi32>
    %427 = arith.addi %426, %4 : vector<8x128xi32>
    %c256_i32 = arith.constant 256 : i32
    %428 = vector.broadcast %c256_i32 : i32 to vector<8x128xi32>
    %429 = arith.cmpi slt, %427, %428 : vector<8x128xi32>
    %430 = arith.andi %420, %429 : vector<8x128xi1>
    %431 = arith.andi %422, %429 : vector<8x128xi1>
    %c0_79 = arith.constant 0 : index
    %c4 = arith.constant 4 : index
    %c0_80 = arith.constant 0 : index
    %432 = arith.index_cast %7 : i32 to index
    %c0_81 = arith.constant 0 : index
    %433 = vector.load %arg4[%c0_79, %c4, %c0_80, %432, %c0_81] : memref<1x5x1x8x128xf32, #tpu.memory_space<vmem>>, vector<1x1x1x8x128xf32>
    %434 = vector.shape_cast %433 : vector<1x1x1x8x128xf32> to vector<8x128xf32>
    %435 = math.absf %434 : vector<8x128xf32>
    %cst_82 = arith.constant 0.000000e+00 : f32
    %436 = vector.broadcast %cst_82 : f32 to vector<8x128xf32>
    %437 = arith.subf %436, %435 : vector<8x128xf32>
    %438 = math.exp %437 : vector<8x128xf32>
    %439 = math.log1p %438 : vector<8x128xf32>
    %cst_83 = arith.constant 0.000000e+00 : f32
    %440 = vector.broadcast %cst_83 : f32 to vector<8x128xf32>
    %441 = arith.maximumf %434, %440 : vector<8x128xf32>
    %cst_84 = arith.constant 1.000000e+00 : f32
    %442 = vector.broadcast %cst_84 : f32 to vector<8x128xf32>
    %443 = arith.addf %442, %438 : vector<8x128xf32>
    %cst_85 = arith.constant 1.000000e+00 : f32
    %444 = vector.broadcast %cst_85 : f32 to vector<8x128xf32>
    %445 = arith.divf %444, %443 : vector<8x128xf32>
    %cst_86 = arith.constant 0.000000e+00 : f32
    %446 = vector.broadcast %cst_86 : f32 to vector<8x128xf32>
    %447 = arith.cmpf oge, %434, %446 : vector<8x128xf32>
    %448 = arith.mulf %438, %445 : vector<8x128xf32>
    %449 = arith.select %447, %445, %448 : vector<8x128xi1>, vector<8x128xf32>
    %cst_87 = arith.constant 0.000000e+00 : f32
    %450 = vector.broadcast %cst_87 : f32 to vector<8x128xf32>
    %451 = arith.cmpf oge, %434, %450 : vector<8x128xf32>
    %452 = arith.mulf %438, %445 : vector<8x128xf32>
    %453 = arith.select %451, %452, %445 : vector<8x128xi1>, vector<8x128xf32>
    %cst_88 = arith.constant 2.500000e-01 : f32
    %454 = vector.broadcast %cst_88 : f32 to vector<8x128xf32>
    %455 = arith.mulf %454, %453 : vector<8x128xf32>
    %456 = arith.mulf %455, %453 : vector<8x128xf32>
    %457 = arith.subf %441, %434 : vector<8x128xf32>
    %458 = arith.addf %457, %439 : vector<8x128xf32>
    %459 = arith.mulf %456, %458 : vector<8x128xf32>
    %cst_89 = arith.constant 7.500000e-01 : f32
    %460 = vector.broadcast %cst_89 : f32 to vector<8x128xf32>
    %461 = arith.mulf %460, %449 : vector<8x128xf32>
    %462 = arith.mulf %461, %449 : vector<8x128xf32>
    %463 = arith.addf %441, %439 : vector<8x128xf32>
    %464 = arith.mulf %462, %463 : vector<8x128xf32>
    %c0_90 = arith.constant 0 : index
    %c0_91 = arith.constant 0 : index
    %c0_92 = arith.constant 0 : index
    %465 = arith.index_cast %7 : i32 to index
    %c0_93 = arith.constant 0 : index
    %466 = vector.load %arg4[%c0_90, %c0_91, %c0_92, %465, %c0_93] : memref<1x5x1x8x128xf32, #tpu.memory_space<vmem>>, vector<1x1x1x8x128xf32>
    %467 = vector.shape_cast %466 : vector<1x1x1x8x128xf32> to vector<8x128xf32>
    %c0_94 = arith.constant 0 : index
    %c1_95 = arith.constant 1 : index
    %c0_96 = arith.constant 0 : index
    %468 = arith.index_cast %7 : i32 to index
    %c0_97 = arith.constant 0 : index
    %469 = vector.load %arg4[%c0_94, %c1_95, %c0_96, %468, %c0_97] : memref<1x5x1x8x128xf32, #tpu.memory_space<vmem>>, vector<1x1x1x8x128xf32>
    %470 = vector.shape_cast %469 : vector<1x1x1x8x128xf32> to vector<8x128xf32>
    %c0_98 = arith.constant 0 : index
    %c2_99 = arith.constant 2 : index
    %c0_100 = arith.constant 0 : index
    %471 = arith.index_cast %7 : i32 to index
    %c0_101 = arith.constant 0 : index
    %472 = vector.load %arg4[%c0_98, %c2_99, %c0_100, %471, %c0_101] : memref<1x5x1x8x128xf32, #tpu.memory_space<vmem>>, vector<1x1x1x8x128xf32>
    %473 = vector.shape_cast %472 : vector<1x1x1x8x128xf32> to vector<8x128xf32>
    %c0_102 = arith.constant 0 : index
    %c3_103 = arith.constant 3 : index
    %c0_104 = arith.constant 0 : index
    %474 = arith.index_cast %7 : i32 to index
    %c0_105 = arith.constant 0 : index
    %475 = vector.load %arg4[%c0_102, %c3_103, %c0_104, %474, %c0_105] : memref<1x5x1x8x128xf32, #tpu.memory_space<vmem>>, vector<1x1x1x8x128xf32>
    %476 = vector.shape_cast %475 : vector<1x1x1x8x128xf32> to vector<8x128xf32>
    %477 = arith.addf %467, %473 : vector<8x128xf32>
    %478 = arith.addf %411, %415 : vector<8x128xf32>
    %479 = arith.minimumf %477, %478 : vector<8x128xf32>
    %480 = arith.maximumf %467, %411 : vector<8x128xf32>
    %481 = arith.subf %479, %480 : vector<8x128xf32>
    %cst_106 = arith.constant 0.000000e+00 : f32
    %482 = vector.broadcast %cst_106 : f32 to vector<8x128xf32>
    %483 = arith.maximumf %481, %482 : vector<8x128xf32>
    %484 = arith.addf %470, %476 : vector<8x128xf32>
    %485 = arith.addf %413, %417 : vector<8x128xf32>
    %486 = arith.minimumf %484, %485 : vector<8x128xf32>
    %487 = arith.maximumf %470, %413 : vector<8x128xf32>
    %488 = arith.subf %486, %487 : vector<8x128xf32>
    %cst_107 = arith.constant 0.000000e+00 : f32
    %489 = vector.broadcast %cst_107 : f32 to vector<8x128xf32>
    %490 = arith.maximumf %488, %489 : vector<8x128xf32>
    %491 = arith.mulf %483, %490 : vector<8x128xf32>
    %492 = arith.mulf %473, %476 : vector<8x128xf32>
    %493 = arith.mulf %415, %417 : vector<8x128xf32>
    %494 = arith.addf %492, %493 : vector<8x128xf32>
    %495 = arith.subf %494, %491 : vector<8x128xf32>
    %496 = arith.divf %491, %495 : vector<8x128xf32>
    %cst_108 = arith.constant 0.00999999977 : f32
    %497 = vector.broadcast %cst_108 : f32 to vector<8x128xf32>
    %498 = arith.addf %496, %497 : vector<8x128xf32>
    %499 = math.log %498 : vector<8x128xf32>
    %cst_109 = arith.constant 0.000000e+00 : f32
    %500 = vector.broadcast %cst_109 : f32 to vector<8x128xf32>
    %501 = arith.subf %500, %499 : vector<8x128xf32>
    %cst_110 = arith.constant 0.000000e+00 : f32
    %502 = vector.broadcast %cst_110 : f32 to vector<8x128xf32>
    %503 = arith.select %430, %459, %502 : vector<8x128xi1>, vector<8x128xf32>
    %504 = arith.addf %5, %503 : vector<8x128xf32>
    %cst_111 = arith.constant 0.000000e+00 : f32
    %505 = vector.broadcast %cst_111 : f32 to vector<8x128xf32>
    %506 = arith.select %431, %464, %505 : vector<8x128xi1>, vector<8x128xf32>
    %507 = arith.addf %5, %506 : vector<8x128xf32>
    %cst_112 = arith.constant 0.000000e+00 : f32
    %508 = vector.broadcast %cst_112 : f32 to vector<8x128xf32>
    %509 = arith.select %430, %501, %508 : vector<8x128xi1>, vector<8x128xf32>
    %510 = arith.addf %5, %509 : vector<8x128xf32>
    %cst_113 = arith.constant 1.000000e+00 : f32
    %cst_114 = arith.constant 0.000000e+00 : f32
    %511 = vector.broadcast %cst_113 : f32 to vector<8x128xf32>
    %512 = vector.broadcast %cst_114 : f32 to vector<8x128xf32>
    %513 = arith.select %430, %511, %512 : vector<8x128xi1>, vector<8x128xf32>
    %514 = arith.addf %5, %513 : vector<8x128xf32>
    %cst_115 = arith.constant 1.000000e+00 : f32
    %cst_116 = arith.constant 0.000000e+00 : f32
    %515 = vector.broadcast %cst_115 : f32 to vector<8x128xf32>
    %516 = vector.broadcast %cst_116 : f32 to vector<8x128xf32>
    %517 = arith.select %431, %515, %516 : vector<8x128xi1>, vector<8x128xf32>
    %518 = arith.addf %5, %517 : vector<8x128xf32>
    %c1_i32_117 = arith.constant 1 : i32
    %c0_118 = arith.constant 0 : index
    %c0_119 = arith.constant 0 : index
    %c0_120 = arith.constant 0 : index
    %c0_121 = arith.constant 0 : index
    %519 = vector.load %arg5[%c0_118, %c0_119, %c0_120, %c0_121] : memref<1x1x40x128xf32, #tpu.memory_space<vmem>>, vector<1x1x8x128xf32>
    %520 = vector.shape_cast %519 : vector<1x1x8x128xf32> to vector<8x128xf32>
    %521 = vector.shape_cast %504 : vector<8x128xf32> to vector<1x1x8x128xf32>
    tpu.vector_store %arg5[%c0_118, %c0_119, %c0_120, %c0_121], %521 {strides = array<i32>} : memref<1x1x40x128xf32, #tpu.memory_space<vmem>>, vector<1x1x8x128xf32>,
    %c0_122 = arith.constant 0 : index
    %c0_123 = arith.constant 0 : index
    %c8 = arith.constant 8 : index
    %c0_124 = arith.constant 0 : index
    %522 = vector.load %arg5[%c0_122, %c0_123, %c8, %c0_124] : memref<1x1x40x128xf32, #tpu.memory_space<vmem>>, vector<1x1x8x128xf32>
    %523 = vector.shape_cast %522 : vector<1x1x8x128xf32> to vector<8x128xf32>
    %524 = vector.shape_cast %507 : vector<8x128xf32> to vector<1x1x8x128xf32>
    tpu.vector_store %arg5[%c0_122, %c0_123, %c8, %c0_124], %524 {strides = array<i32>} : memref<1x1x40x128xf32, #tpu.memory_space<vmem>>, vector<1x1x8x128xf32>,
    %c0_125 = arith.constant 0 : index
    %c0_126 = arith.constant 0 : index
    %c16 = arith.constant 16 : index
    %c0_127 = arith.constant 0 : index
    %525 = vector.load %arg5[%c0_125, %c0_126, %c16, %c0_127] : memref<1x1x40x128xf32, #tpu.memory_space<vmem>>, vector<1x1x8x128xf32>
    %526 = vector.shape_cast %525 : vector<1x1x8x128xf32> to vector<8x128xf32>
    %527 = vector.shape_cast %510 : vector<8x128xf32> to vector<1x1x8x128xf32>
    tpu.vector_store %arg5[%c0_125, %c0_126, %c16, %c0_127], %527 {strides = array<i32>} : memref<1x1x40x128xf32, #tpu.memory_space<vmem>>, vector<1x1x8x128xf32>,
    %c0_128 = arith.constant 0 : index
    %c0_129 = arith.constant 0 : index
    %c24 = arith.constant 24 : index
    %c0_130 = arith.constant 0 : index
    %528 = vector.load %arg5[%c0_128, %c0_129, %c24, %c0_130] : memref<1x1x40x128xf32, #tpu.memory_space<vmem>>, vector<1x1x8x128xf32>
    %529 = vector.shape_cast %528 : vector<1x1x8x128xf32> to vector<8x128xf32>
    %530 = vector.shape_cast %514 : vector<8x128xf32> to vector<1x1x8x128xf32>
    tpu.vector_store %arg5[%c0_128, %c0_129, %c24, %c0_130], %530 {strides = array<i32>} : memref<1x1x40x128xf32, #tpu.memory_space<vmem>>, vector<1x1x8x128xf32>,
    %c0_131 = arith.constant 0 : index
    %c0_132 = arith.constant 0 : index
    %c32 = arith.constant 32 : index
    %c0_133 = arith.constant 0 : index
    %531 = vector.load %arg5[%c0_131, %c0_132, %c32, %c0_133] : memref<1x1x40x128xf32, #tpu.memory_space<vmem>>, vector<1x1x8x128xf32>
    %532 = vector.shape_cast %531 : vector<1x1x8x128xf32> to vector<8x128xf32>
    %533 = vector.shape_cast %518 : vector<8x128xf32> to vector<1x1x8x128xf32>
    tpu.vector_store %arg5[%c0_131, %c0_132, %c32, %c0_133], %533 {strides = array<i32>} : memref<1x1x40x128xf32, #tpu.memory_space<vmem>>, vector<1x1x8x128xf32>,
    return
  }
  func.func @transform_0(%arg0: i32, %arg1: i32) -> i32 {
    %c0_i32 = arith.constant 0 : i32
    %c0_i32_0 = arith.constant 0 : i32
    return %c0_i32 : i32
  }
  func.func @transform_1(%arg0: i32, %arg1: i32) -> (i32, i32, i32, i32) {
    %c0_i32 = arith.constant 0 : i32
    %c0_i32_0 = arith.constant 0 : i32
    %c0_i32_1 = arith.constant 0 : i32
    %c0_i32_2 = arith.constant 0 : i32
    return %c0_i32, %arg0, %c0_i32_0, %c0_i32_1 : i32, i32, i32, i32
  }
  func.func @transform_2(%arg0: i32, %arg1: i32) -> (i32, i32, i32, i32, i32) {
    %c0_i32 = arith.constant 0 : i32
    %c0_i32_0 = arith.constant 0 : i32
    %c0_i32_1 = arith.constant 0 : i32
    %c0_i32_2 = arith.constant 0 : i32
    return %arg1, %c0_i32, %arg0, %c0_i32_0, %c0_i32_1 : i32, i32, i32, i32, i32
  }
  func.func @transform_3(%arg0: i32, %arg1: i32) -> (i32, i32, i32, i32) {
    %c0_i32 = arith.constant 0 : i32
    %c0_i32_0 = arith.constant 0 : i32
    %c0_i32_1 = arith.constant 0 : i32
    return %arg1, %arg0, %c0_i32, %c0_i32_0 : i32, i32, i32, i32
  }
}

</mosaic_0001>

<llo_original>
// kernel: tpu_custom_call.1
$region0: #{tpu_custom_call.1}
  #allocation0 [shape = 'u32[]', space=smem, size = 0x4, offset = 0x4, fixed_abs, tag = 'smem constant byte address 0x4 - core index']
  #allocation1 [shape = 'u32[72,128]{1,0:T(1,128)}', space=vmem, size = 0x9000, scoped, tag = 'internal scratch']
  %s0 = inlined_call_operand.hbm [shape: f32[64], index: 0, kind: input, shape index: {}]
  %s1 = inlined_call_operand.hbm [shape: f32[4,1,8,128], index: 1, kind: input, shape index: {}]
  %s2 = inlined_call_operand.hbm [shape: f32[2,5,1,8,128], index: 2, kind: input, shape index: {}]
  %s3 = inlined_call_operand.hbm [shape: f32[2,1,40,128], index: 3, kind: output, shape index: {}]
  %s4 = sld [smem:[#allocation0]]
  $region57: #{tpu_custom_call.1} parent=0
    _
  %s6 = ssub.s32 1, %s4
  %s7 = scalar_select 0, %s6, %s4
  $region1: #{tpu_custom_call.1} parent=0
    #allocation2 [shape = 'u8[512]{0}', space=smem, size = 0x200, scoped, tag = 'input window, operand 0, single buffered']
    #allocation3 [shape = 's32[2]{0}', space=sflag, size = 0x8, scoped, tag = 'scoped memory for tpu_custom_call.1']
    #allocation4 [shape = 's32[2]{0}', space=sflag, size = 0x8, scoped, tag = 'scoped memory for tpu_custom_call.1']
    #allocation5 [shape = 's32[2]{0}', space=sflag, size = 0x8, scoped, tag = 'scoped memory for tpu_custom_call.1']
    #allocation6 [shape = 'u8[16384]{0}', space=vmem, size = 0x4000, scoped, tag = 'input window, operand 1, single buffered']
    #allocation7 [shape = 'u8[40960]{0}', space=vmem, size = 0xa000, scoped, tag = 'input window, operand 2']
    #allocation8 [shape = 's32[2]{0}', space=sflag, size = 0x8, scoped, tag = 'scoped memory for tpu_custom_call.1']
    #allocation9 [shape = 'u8[40960]{0}', space=vmem, size = 0xa000, scoped, tag = 'output window, operand 0']
    %8 = vsyncpa [#allocation5], 0
    %9 = vsyncpa [#allocation3], 0
    %10 = vsyncpa [#allocation8], 0
    %s11 = scalar_lea.sflag [#allocation8], 1
    %12 = vsyncpa %s11, 0
    %13 = vsyncpa [#allocation4], 0
    %s14 = scalar_lea.sflag [#allocation4], 1
    %15 = vsyncpa %s14, 0
    loop: start=0, step=1, limit=4
    $region2: #{tpu_custom_call.1} parent=1 // loop_pre_header
      _
    $region3: #{tpu_custom_call.1} parent=1 // loop_header
      %s17 = sphi 0, %s21
      %p18 = scmp.ge.s32.totalorder %s17, 4
      %s24 = sphi 0, %s36
      %s25 = sphi 0, %s32
      %s26 = sphi 0, %s24
      %s27 = sphi 0, %s25
      %s28 = sphi 0, %s26
      %s29 = sphi 0, %s27
      %s37 = sphi 0, %s37
      %s39 = sphi 0, %s37
      %s40 = sphi 0, %s39
      %s54 = sphi 0, %s40
      %s60 = sphi 0, %s62
      %s63 = sphi 0, %s60
      %s64 = sphi 0, %s63
      %s80 = sphi 0, %s64
      %s88 = sphi 0, %s90
      %s91 = sphi 0, %s88
      %s92 = sphi 0, %s91
      %s108 = sphi 0, %s92
      %s116 = sphi 0, %s118
      %s119 = sphi 0, %s116
      %s120 = sphi 0, %s119
      %s136 = sphi 0, %s120
    $region4: #{tpu_custom_call.1} parent=1 // loop_header_branch
      %20 = sbr.rel (%p18) target = $region8
    $region5: #{tpu_custom_call.1} parent=1 // loop_body
      %s22 = ssub.s32 %s17, 1
      %s23 = ssub.s32 %s17, 2
      %s30 = sadd.s32 1, %s25
      %p31 = scmp.ge.s32.totalorder %s30, 2
      %s32 = scalar_select %p31, 0, %s30
      %s33 = sadd.s32 1, %s24
      %s34 = scalar_select %p31, %s33, %s24
      %p35 = scmp.ge.s32.totalorder %s34, 1
      %s36 = scalar_select %p35, 0, %s34
      %s38 = sadd.s32 %s37, 1
      %p41 = scmp.eq.s32.totalorder %s17, 1
      %p42 = scmp.ne.s32.totalorder %s37, %s39
      %p43 = scmp.eq.s32.totalorder %s17, 0
      %p44 = por %p42, %p43
      %p45 = scmp.ne.s32.totalorder %s37, %s39
      %p46 = scmp.eq.s32.totalorder %s22, 1
      %p47 = por %p45, %p46
      %p48 = scmp.ne.s32.totalorder %s39, %s40
      %p49 = scmp.eq.s32.totalorder %s22, 0
      %p50 = por %p48, %p49
      %p51 = scmp.ne.s32.totalorder %s39, %s40
      %p52 = scmp.eq.s32.totalorder %s23, 1
      %p53 = por %p51, %p52
      %p55 = scmp.ne.s32.totalorder %s40, %s54
      %p56 = scmp.eq.s32.totalorder %s23, 0
      %p57 = por %p55, %p56
      %s58 = ssub.s32 %s24, %s36
      %p59 = scmp.eq.s32.totalorder %s58, 0
      %s61 = sadd.s32 %s60, 1
      %s62 = scalar_select %p59, %s60, %s61
      %p65 = pneg %p59
      %p66 = scmp.eq.s32.totalorder %s17, 1
      %p67 = por %p65, %p66
      %p68 = scmp.ne.s32.totalorder %s60, %s63
      %p69 = scmp.eq.s32.totalorder %s17, 0
      %p70 = por %p68, %p69
      %p71 = scmp.ne.s32.totalorder %s60, %s63
      %p72 = scmp.eq.s32.totalorder %s22, 1
      %p73 = por %p71, %p72
      %p74 = scmp.ne.s32.totalorder %s63, %s64
      %p75 = scmp.eq.s32.totalorder %s22, 0
      %p76 = por %p74, %p75
      %p77 = scmp.ne.s32.totalorder %s63, %s64
      %p78 = scmp.eq.s32.totalorder %s23, 1
      %p79 = por %p77, %p78
      %p81 = scmp.ne.s32.totalorder %s64, %s80
      %p82 = scmp.eq.s32.totalorder %s23, 0
      %p83 = por %p81, %p82
      %s84 = ssub.s32 %s25, %s32
      %s85 = ssub.s32 %s24, %s36
      %s86 = sor.u32 %s84, %s85
      %p87 = scmp.eq.s32.totalorder %s86, 0
      %s89 = sadd.s32 %s88, 1
      %s90 = scalar_select %p87, %s88, %s89
      %p93 = pneg %p87
      %p94 = scmp.eq.s32.totalorder %s17, 1
      %p95 = por %p93, %p94
      %p96 = scmp.ne.s32.totalorder %s88, %s91
      %p97 = scmp.eq.s32.totalorder %s17, 0
      %p98 = por %p96, %p97
      %p99 = scmp.ne.s32.totalorder %s88, %s91
      %p100 = scmp.eq.s32.totalorder %s22, 1
      %p101 = por %p99, %p100
      %p102 = scmp.ne.s32.totalorder %s91, %s92
      %p103 = scmp.eq.s32.totalorder %s22, 0
      %p104 = por %p102, %p103
      %p105 = scmp.ne.s32.totalorder %s91, %s92
      %p106 = scmp.eq.s32.totalorder %s23, 1
      %p107 = por %p105, %p106
      %p109 = scmp.ne.s32.totalorder %s92, %s108
      %p110 = scmp.eq.s32.totalorder %s23, 0
      %p111 = por %p109, %p110
      %s112 = ssub.s32 %s25, %s32
      %s113 = ssub.s32 %s24, %s36
      %s114 = sor.u32 %s112, %s113
      %p115 = scmp.eq.s32.totalorder %s114, 0
      %s117 = sadd.s32 %s116, 1
      %s118 = scalar_select %p115, %s116, %s117
      %p121 = pneg %p115
      %p122 = scmp.eq.s32.totalorder %s17, 1
      %p123 = por %p121, %p122
      %p124 = scmp.ne.s32.totalorder %s116, %s119
      %p125 = scmp.eq.s32.totalorder %s17, 0
      %p126 = por %p124, %p125
      %p127 = scmp.ne.s32.totalorder %s116, %s119
      %p128 = scmp.eq.s32.totalorder %s22, 1
      %p129 = por %p127, %p128
      %p130 = scmp.ne.s32.totalorder %s119, %s120
      %p131 = scmp.eq.s32.totalorder %s22, 0
      %p132 = por %p130, %p131
      %p133 = scmp.ne.s32.totalorder %s119, %s120
      %p134 = scmp.eq.s32.totalorder %s23, 1
      %p135 = por %p133, %p134
      %p137 = scmp.ne.s32.totalorder %s120, %s136
      %p138 = scmp.eq.s32.totalorder %s23, 0
      %p139 = por %p137, %p138
      %p140 = scmp.le.s32.totalorder 1, %s17
      %p141 = scmp.lt.s32.totalorder %s17, 3
      %p142 = pnand %p140, %p141
      %p143 = pneg %p142
      // Predicated region
      $region9: #{tpu_custom_call.1} parent=5 // pred_check
        _
      $region10: #{tpu_custom_call.1} parent=5 // pred_check_branch
        %145 = sbr.rel (%p142) target = $region12
      $region11: #{tpu_custom_call.1} parent=5 // pred_region
        %s146 = ssub.s32 %s17, 1
        // Predicated region
        $region13: #{tpu_custom_call.1} parent=11 // pred_check
          %p147 = pneg %p50
        $region14: #{tpu_custom_call.1} parent=11 // pred_check_branch
          %149 = sbr.rel (%p147) target = $region16
        $region15: #{tpu_custom_call.1} parent=11 // pred_region
          %151 = vsyncadd [#allocation5], 0
          %s153 = sshll.u32 %s0, 4
          %s154 = int_to_ptr.hbm [resolvable:$true] %s153
          %156 = dma.hbm_to_smem %s154, 16, [#allocation2], [#allocation5]
        $region16: #{tpu_custom_call.1} parent=11 // pred_fallthru
          _
        // Predicated region
        $region17: #{tpu_custom_call.1} parent=11 // pred_check
          %p157 = pneg %p76
        $region18: #{tpu_custom_call.1} parent=11 // pred_check_branch
          %159 = sbr.rel (%p157) target = $region20
        $region19: #{tpu_custom_call.1} parent=11 // pred_region
          %161 = vsyncadd [#allocation3], 0
          %s162 = smul.addr %s26, 8
          %s163 = scalar_lea.hbm %s1, %s162
          %s164 = sshll.u32 %s163, 4
          %s165 = int_to_ptr.hbm [resolvable:$true] %s164
          %s166 = sshll.u32 [#allocation6], 4
          %s167 = int_to_ptr.vmem [resolvable:$true] %s166
          %172 = dma.hbm_to_vmem [thread:$0]  %s165, 512, %s167, [#allocation3], 128, 128, 8
        $region20: #{tpu_custom_call.1} parent=11 // pred_fallthru
          _
      $region12: #{tpu_custom_call.1} parent=5 // pred_fallthru
        _
      %p173 = scmp.lt.s32.totalorder %s17, 2
      // Predicated region
      $region21: #{tpu_custom_call.1} parent=5 // pred_check
        %p174 = pneg %p173
      $region22: #{tpu_custom_call.1} parent=5 // pred_check_branch
        %176 = sbr.rel (%p174) target = $region24
      $region23: #{tpu_custom_call.1} parent=5 // pred_region
        // Predicated region
        $region25: #{tpu_custom_call.1} parent=23 // pred_check
          %p177 = pneg %p98
        $region26: #{tpu_custom_call.1} parent=23 // pred_check_branch
          %179 = sbr.rel (%p177) target = $region28
        $region27: #{tpu_custom_call.1} parent=23 // pred_region
          %s180 = sand.u32 %s88, 1
          %s181 = scalar_lea.sflag [#allocation8], %s180
          %s182 = sand.u32 %s88, 1
          %s183 = smul.addr %s182, 40
          %s184 = scalar_lea.vmem [#allocation7], %s183
          %186 = vsyncadd %s181, 0
          %s187 = smul.addr %s25, 5
          %s188 = sadd.s32 %s24, %s187
          %s189 = smul.addr %s188, 8
          %s190 = scalar_lea.hbm %s2, %s189
          %s191 = sshll.u32 %s190, 4
          %s192 = int_to_ptr.hbm [resolvable:$true] %s191
          %s193 = sshll.u32 %s184, 4
          %s194 = int_to_ptr.vmem [resolvable:$true] %s193
          %199 = dma.hbm_to_vmem [thread:$0]  %s192, 640, %s194, %s181, 128, 128, 8
        $region28: #{tpu_custom_call.1} parent=23 // pred_fallthru
          _
      $region24: #{tpu_custom_call.1} parent=5 // pred_fallthru
        _
      %p200 = scmp.le.s32.totalorder 1, %s17
      %p201 = scmp.lt.s32.totalorder %s17, 3
      %p202 = pnand %p200, %p201
      %p203 = pneg %p202
      // Predicated region
      $region29: #{tpu_custom_call.1} parent=5 // pred_check
        _
      $region30: #{tpu_custom_call.1} parent=5 // pred_check_branch
        %205 = sbr.rel (%p202) target = $region32
      $region31: #{tpu_custom_call.1} parent=5 // pred_region
        %s206 = ssub.s32 %s17, 1
        // Predicated region
        $region33: #{tpu_custom_call.1} parent=31 // pred_check
          %p207 = pneg %p50
        $region34: #{tpu_custom_call.1} parent=31 // pred_check_branch
          %209 = sbr.rel (%p207) target = $region36
        $region35: #{tpu_custom_call.1} parent=31 // pred_region
          %211 = dma.done [#allocation5], 16
        $region36: #{tpu_custom_call.1} parent=31 // pred_fallthru
          _
        // Predicated region
        $region37: #{tpu_custom_call.1} parent=31 // pred_check
          %p212 = pneg %p76
        $region38: #{tpu_custom_call.1} parent=31 // pred_check_branch
          %214 = sbr.rel (%p212) target = $region40
        $region39: #{tpu_custom_call.1} parent=31 // pred_region
          %216 = dma.done [#allocation3], 512
        $region40: #{tpu_custom_call.1} parent=31 // pred_fallthru
          _
        %s217 = sand.u32 %s91, 1
        %s218 = scalar_lea.sflag [#allocation8], %s217
        %s219 = sand.u32 %s91, 1
        %s220 = smul.addr %s219, 40
        %s221 = scalar_lea.vmem [#allocation7], %s220
        // Predicated region
        $region41: #{tpu_custom_call.1} parent=31 // pred_check
          %p222 = pneg %p104
        $region42: #{tpu_custom_call.1} parent=31 // pred_check_branch
          %224 = sbr.rel (%p222) target = $region44
        $region43: #{tpu_custom_call.1} parent=31 // pred_region
          %226 = dma.done %s218, 640
        $region44: #{tpu_custom_call.1} parent=31 // pred_fallthru
          _
        %227 = sfence
        %p228 = pneg %p50
        %p229 = pneg %p47
        %p230 = pneg %p76
        %p231 = pneg %p73
        %s232 = sand.u32 %s91, 1
        %s233 = scalar_lea.sflag [#allocation8], %s232
        %s234 = sand.u32 %s91, 1
        %s235 = smul.addr %s234, 40
        %s236 = scalar_lea.vmem [#allocation7], %s235
        %p237 = pneg %p104
        %p238 = pneg %p101
        %p239 = pneg %p132
        %p240 = pneg %p129
        %s241 = sand.u32 %s119, 1
        %s242 = scalar_lea.sflag [#allocation4], %s241
        %s243 = sand.u32 %s119, 1
        %s244 = smul.addr %s243, 40
        %s245 = scalar_lea.vmem [#allocation9], %s244
        %v246 = vlaneseq
        %v247 = vshrl.u32 %v246, 7
        %v248 = vlaneseq
        %v249 = vand.u32 %v248, 127
        %v250 = vmul.u32 %v247, 128
        %v251 = vadd.s32 %v250, %v249
        %v252 = vld [vmem:[#allocation6] sm:$0xff]
        %s253 = sadd.s32 0, 8
        %s254 = scalar_lea.vmem [#allocation6], %s253
        %v255 = vld [vmem:[%s254] sm:$0xff]
        %s256 = sadd.s32 0, 16
        %s257 = scalar_lea.vmem [#allocation6], %s256
        %v258 = vld [vmem:[%s257] sm:$0xff]
        %s259 = sadd.s32 0, 24
        %s260 = scalar_lea.vmem [#allocation6], %s259
        %v261 = vld [vmem:[%s260] sm:$0xff]
        %v262 = vadd.f32 %v252, %v258
        %v263 = vadd.f32 %v255, %v261
        %v264 = vmul.f32 %v258, %v261
        %s265 = smul.u32 %s27, 32
        %s266 = sld [smem:[#allocation2 + %s265]]
        %s267 = sadd.s32 %s265, 1
        %s268 = sld [smem:[#allocation2 + %s267]]
        %s269 = sadd.s32 %s265, 2
        %s270 = sld [smem:[#allocation2 + %s269]]
        %s271 = sadd.s32 %s265, 3
        %s272 = sld [smem:[#allocation2 + %s271]]
        %v273 = vstv %s266
        %v274 = vmax.f32 %v252, %v273
        %v275 = vstv %s268
        %v276 = vmax.f32 %v255, %v275
        %s277 = sadd.f32 %s266, %s270
        %v278 = vstv %s277
        %v279 = vmin.f32 %v262, %v278
        %s280 = sadd.f32 %s268, %s272
        %v281 = vstv %s280
        %v282 = vmin.f32 %v263, %v281
        %v283 = vsub.f32 %v279, %v274
        %v284 = vmax.f32 %v283, 0.0
        %v285 = vsub.f32 %v282, %v276
        %v286 = vmax.f32 %v285, 0.0
        %v287 = vmul.f32 %v284, %v286
        %s288 = smul.f32 %s270, %s272
        %v289 = vstv %s288
        %v290 = vadd.f32 %v264, %v289
        %v291 = vsub.f32 %v290, %v287
        %v292 = vmul.f32 %v291, -1.0
        %vm293 = vcmp.gt.f32.partialorder %v287, %v292
        %v294 = vsel %vm293, %v287, -1.0
        %v295 = vsel %vm293, %v291, 1.0
        %v296 = vsel %vm293, %v273, 0.0
        %v297 = vsel %vm293, %v275, 0.0
        %v298 = vstv %s270
        %v299 = vsel %vm293, %v298, 0.0
        %v300 = vstv %s272
        %v301 = vsel %vm293, %v300, 0.0
        %s302 = sadd.s32 %s265, 4
        %s303 = sld [smem:[#allocation2 + %s302]]
        %s304 = sadd.s32 %s265, 5
        %s305 = sld [smem:[#allocation2 + %s304]]
        %s306 = sadd.s32 %s265, 6
        %s307 = sld [smem:[#allocation2 + %s306]]
        %s308 = sadd.s32 %s265, 7
        %s309 = sld [smem:[#allocation2 + %s308]]
        %v310 = vstv %s303
        %v311 = vmax.f32 %v252, %v310
        %v312 = vstv %s305
        %v313 = vmax.f32 %v255, %v312
        %s314 = sadd.f32 %s303, %s307
        %v315 = vstv %s314
        %v316 = vmin.f32 %v262, %v315
        %s317 = sadd.f32 %s305, %s309
        %v318 = vstv %s317
        %v319 = vmin.f32 %v263, %v318
        %v320 = vsub.f32 %v316, %v311
        %v321 = vmax.f32 %v320, 0.0
        %v322 = vsub.f32 %v319, %v313
        %v323 = vmax.f32 %v322, 0.0
        %v324 = vmul.f32 %v321, %v323
        %s325 = smul.f32 %s307, %s309
        %v326 = vstv %s325
        %v327 = vadd.f32 %v264, %v326
        %v328 = vsub.f32 %v327, %v324
        %v329 = vmul.f32 %v324, %v295
        %v330 = vmul.f32 %v294, %v328
        %vm331 = vcmp.gt.f32.partialorder %v329, %v330
        %v332 = vsel %vm331, %v324, %v294
        %v333 = vsel %vm331, %v328, %v295
        %v334 = vsel %vm331, %v310, %v296
        %v335 = vsel %vm331, %v312, %v297
        %v336 = vstv %s307
        %v337 = vsel %vm331, %v336, %v299
        %v338 = vstv %s309
        %v339 = vsel %vm331, %v338, %v301
        %s340 = sadd.s32 %s265, 8
        %s341 = sld [smem:[#allocation2 + %s340]]
        %s342 = sadd.s32 %s265, 9
        %s343 = sld [smem:[#allocation2 + %s342]]
        %s344 = sadd.s32 %s265, 10
        %s345 = sld [smem:[#allocation2 + %s344]]
        %s346 = sadd.s32 %s265, 11
        %s347 = sld [smem:[#allocation2 + %s346]]
        %v348 = vstv %s341
        %v349 = vmax.f32 %v252, %v348
        %v350 = vstv %s343
        %v351 = vmax.f32 %v255, %v350
        %s352 = sadd.f32 %s341, %s345
        %v353 = vstv %s352
        %v354 = vmin.f32 %v262, %v353
        %s355 = sadd.f32 %s343, %s347
        %v356 = vstv %s355
        %v357 = vmin.f32 %v263, %v356
        %v358 = vsub.f32 %v354, %v349
        %v359 = vmax.f32 %v358, 0.0
        %v360 = vsub.f32 %v357, %v351
        %v361 = vmax.f32 %v360, 0.0
        %v362 = vmul.f32 %v359, %v361
        %s363 = smul.f32 %s345, %s347
        %v364 = vstv %s363
        %v365 = vadd.f32 %v264, %v364
        %v366 = vsub.f32 %v365, %v362
        %v367 = vmul.f32 %v362, %v333
        %v368 = vmul.f32 %v332, %v366
        %vm369 = vcmp.gt.f32.partialorder %v367, %v368
        %v370 = vsel %vm369, %v362, %v332
        %v371 = vsel %vm369, %v366, %v333
        %v372 = vsel %vm369, %v348, %v334
        %v373 = vsel %vm369, %v350, %v335
        %v374 = vstv %s345
        %v375 = vsel %vm369, %v374, %v337
        %v376 = vstv %s347
        %v377 = vsel %vm369, %v376, %v339
        %s378 = sadd.s32 %s265, 12
        %s379 = sld [smem:[#allocation2 + %s378]]
        %s380 = sadd.s32 %s265, 13
        %s381 = sld [smem:[#allocation2 + %s380]]
        %s382 = sadd.s32 %s265, 14
        %s383 = sld [smem:[#allocation2 + %s382]]
        %s384 = sadd.s32 %s265, 15
        %s385 = sld [smem:[#allocation2 + %s384]]
        %v386 = vstv %s379
        %v387 = vmax.f32 %v252, %v386
        %v388 = vstv %s381
        %v389 = vmax.f32 %v255, %v388
        %s390 = sadd.f32 %s379, %s383
        %v391 = vstv %s390
        %v392 = vmin.f32 %v262, %v391
        %s393 = sadd.f32 %s381, %s385
        %v394 = vstv %s393
        %v395 = vmin.f32 %v263, %v394
        %v396 = vsub.f32 %v392, %v387
        %v397 = vmax.f32 %v396, 0.0
        %v398 = vsub.f32 %v395, %v389
        %v399 = vmax.f32 %v398, 0.0
        %v400 = vmul.f32 %v397, %v399
        %s401 = smul.f32 %s383, %s385
        %v402 = vstv %s401
        %v403 = vadd.f32 %v264, %v402
        %v404 = vsub.f32 %v403, %v400
        %v405 = vmul.f32 %v400, %v371
        %v406 = vmul.f32 %v370, %v404
        %vm407 = vcmp.gt.f32.partialorder %v405, %v406
        %v408 = vsel %vm407, %v400, %v370
        %v409 = vsel %vm407, %v404, %v371
        %v410 = vsel %vm407, %v386, %v372
        %v411 = vsel %vm407, %v388, %v373
        %v412 = vstv %s383
        %v413 = vsel %vm407, %v412, %v375
        %v414 = vstv %s385
        %v415 = vsel %vm407, %v414, %v377
        %s416 = sadd.s32 %s265, 16
        %s417 = sld [smem:[#allocation2 + %s416]]
        %s418 = sadd.s32 %s265, 17
        %s419 = sld [smem:[#allocation2 + %s418]]
        %s420 = sadd.s32 %s265, 18
        %s421 = sld [smem:[#allocation2 + %s420]]
        %s422 = sadd.s32 %s265, 19
        %s423 = sld [smem:[#allocation2 + %s422]]
        %v424 = vstv %s417
        %v425 = vmax.f32 %v252, %v424
        %v426 = vstv %s419
        %v427 = vmax.f32 %v255, %v426
        %s428 = sadd.f32 %s417, %s421
        %v429 = vstv %s428
        %v430 = vmin.f32 %v262, %v429
        %s431 = sadd.f32 %s419, %s423
        %v432 = vstv %s431
        %v433 = vmin.f32 %v263, %v432
        %v434 = vsub.f32 %v430, %v425
        %v435 = vmax.f32 %v434, 0.0
        %v436 = vsub.f32 %v433, %v427
        %v437 = vmax.f32 %v436, 0.0
        %v438 = vmul.f32 %v435, %v437
        %s439 = smul.f32 %s421, %s423
        %v440 = vstv %s439
        %v441 = vadd.f32 %v264, %v440
        %v442 = vsub.f32 %v441, %v438
        %v443 = vmul.f32 %v438, %v409
        %v444 = vmul.f32 %v408, %v442
        %vm445 = vcmp.gt.f32.partialorder %v443, %v444
        %v446 = vsel %vm445, %v438, %v408
        %v447 = vsel %vm445, %v442, %v409
        %v448 = vsel %vm445, %v424, %v410
        %v449 = vsel %vm445, %v426, %v411
        %v450 = vstv %s421
        %v451 = vsel %vm445, %v450, %v413
        %v452 = vstv %s423
        %v453 = vsel %vm445, %v452, %v415
        %s454 = sadd.s32 %s265, 20
        %s455 = sld [smem:[#allocation2 + %s454]]
        %s456 = sadd.s32 %s265, 21
        %s457 = sld [smem:[#allocation2 + %s456]]
        %s458 = sadd.s32 %s265, 22
        %s459 = sld [smem:[#allocation2 + %s458]]
        %s460 = sadd.s32 %s265, 23
        %s461 = sld [smem:[#allocation2 + %s460]]
        %v462 = vstv %s455
        %v463 = vmax.f32 %v252, %v462
        %v464 = vstv %s457
        %v465 = vmax.f32 %v255, %v464
        %s466 = sadd.f32 %s455, %s459
        %v467 = vstv %s466
        %v468 = vmin.f32 %v262, %v467
        %s469 = sadd.f32 %s457, %s461
        %v470 = vstv %s469
        %v471 = vmin.f32 %v263, %v470
        %v472 = vsub.f32 %v468, %v463
        %v473 = vmax.f32 %v472, 0.0
        %v474 = vsub.f32 %v471, %v465
        %v475 = vmax.f32 %v474, 0.0
        %v476 = vmul.f32 %v473, %v475
        %s477 = smul.f32 %s459, %s461
        %v478 = vstv %s477
        %v479 = vadd.f32 %v264, %v478
        %v480 = vsub.f32 %v479, %v476
        %v481 = vmul.f32 %v476, %v447
        %v482 = vmul.f32 %v446, %v480
        %vm483 = vcmp.gt.f32.partialorder %v481, %v482
        %v484 = vsel %vm483, %v476, %v446
        %v485 = vsel %vm483, %v480, %v447
        %v486 = vsel %vm483, %v462, %v448
        %v487 = vsel %vm483, %v464, %v449
        %v488 = vstv %s459
        %v489 = vsel %vm483, %v488, %v451
        %v490 = vstv %s461
        %v491 = vsel %vm483, %v490, %v453
        %s492 = sadd.s32 %s265, 24
        %s493 = sld [smem:[#allocation2 + %s492]]
        %s494 = sadd.s32 %s265, 25
        %s495 = sld [smem:[#allocation2 + %s494]]
        %s496 = sadd.s32 %s265, 26
        %s497 = sld [smem:[#allocation2 + %s496]]
        %s498 = sadd.s32 %s265, 27
        %s499 = sld [smem:[#allocation2 + %s498]]
        %v500 = vstv %s493
        %v501 = vmax.f32 %v252, %v500
        %v502 = vstv %s495
        %v503 = vmax.f32 %v255, %v502
        %s504 = sadd.f32 %s493, %s497
        %v505 = vstv %s504
        %v506 = vmin.f32 %v262, %v505
        %s507 = sadd.f32 %s495, %s499
        %v508 = vstv %s507
        %v509 = vmin.f32 %v263, %v508
        %v510 = vsub.f32 %v506, %v501
        %v511 = vmax.f32 %v510, 0.0
        %v512 = vsub.f32 %v509, %v503
        %v513 = vmax.f32 %v512, 0.0
        %v514 = vmul.f32 %v511, %v513
        %s515 = smul.f32 %s497, %s499
        %v516 = vstv %s515
        %v517 = vadd.f32 %v264, %v516
        %v518 = vsub.f32 %v517, %v514
        %v519 = vmul.f32 %v514, %v485
        %v520 = vmul.f32 %v484, %v518
        %vm521 = vcmp.gt.f32.partialorder %v519, %v520
        %v522 = vsel %vm521, %v514, %v484
        %v523 = vsel %vm521, %v518, %v485
        %v524 = vsel %vm521, %v500, %v486
        %v525 = vsel %vm521, %v502, %v487
        %v526 = vstv %s497
        %v527 = vsel %vm521, %v526, %v489
        %v528 = vstv %s499
        %v529 = vsel %vm521, %v528, %v491
        %s530 = sadd.s32 %s265, 28
        %s531 = sld [smem:[#allocation2 + %s530]]
        %s532 = sadd.s32 %s265, 29
        %s533 = sld [smem:[#allocation2 + %s532]]
        %s534 = sadd.s32 %s265, 30
        %s535 = sld [smem:[#allocation2 + %s534]]
        %s536 = sadd.s32 %s265, 31
        %s537 = sld [smem:[#allocation2 + %s536]]
        %v538 = vstv %s531
        %v539 = vmax.f32 %v252, %v538
        %v540 = vstv %s533
        %v541 = vmax.f32 %v255, %v540
        %s542 = sadd.f32 %s531, %s535
        %v543 = vstv %s542
        %v544 = vmin.f32 %v262, %v543
        %s545 = sadd.f32 %s533, %s537
        %v546 = vstv %s545
        %v547 = vmin.f32 %v263, %v546
        %v548 = vsub.f32 %v544, %v539
        %v549 = vmax.f32 %v548, 0.0
        %v550 = vsub.f32 %v547, %v541
        %v551 = vmax.f32 %v550, 0.0
        %v552 = vmul.f32 %v549, %v551
        %s553 = smul.f32 %s535, %s537
        %v554 = vstv %s553
        %v555 = vadd.f32 %v264, %v554
        %v556 = vsub.f32 %v555, %v552
        %v557 = vmul.f32 %v552, %v523
        %v558 = vmul.f32 %v522, %v556
        %vm559 = vcmp.gt.f32.partialorder %v557, %v558
        %v560 = vsel %vm559, %v552, %v522
        %v561 = vsel %vm559, %v556, %v523
        %v562 = vsel %vm559, %v538, %v524
        %v563 = vsel %vm559, %v540, %v525
        %v564 = vstv %s535
        %v565 = vsel %vm559, %v564, %v527
        %v566 = vstv %s537
        %v567 = vsel %vm559, %v566, %v529
        %v568 = vrcp.pop %v561
        %v569 = vmul.f32 %v561, %v568
        %v570 = vsub.f32 1.0, %v569
        %v571 = vmul.f32 %v568, %v570
        %v572 = vadd.f32 %v568, %v571
        %vm573 = vweird.f32 %v561
        %vm574 = vweird.f32 %v568
        %vm575 = vmor %vm573, %vm574
        %v576 = vsel %vm575, %v568, %v572
        %v577 = vand.u32 2147483647, %v561
        %vm578 = vcmp.eq.f32.partialorder %v577, 8.507059e+37
        %v579 = vand.u32 %v561, 2147483648
        %v580 = vor.u32 1.1754944e-38, %v579
        %v581 = vsel %vm578, %v580, %v576
        %v582 = vmul.f32 %v560, %v581
        %vm583 = vcmp.ge.f32.partialorder %v582, 0.5
        %vm584 = vcmp.lt.f32.partialorder %v582, 0.4
        %s585 = smul.u32 %s26, 1024
        %s586 = smul.u32 0, 128
        %s587 = sadd.s32 %s585, %s586
        %v588 = vstv %s587
        %v589 = vadd.s32 %v588, %v251
        %vm590 = vcmp.lt.s32.totalorder %v589, 256
        %vm591 = vmand %vm583, %vm590
        %vm592 = vmand %vm584, %vm590
        %s593 = sadd.s32 0, 32
        %s594 = scalar_lea.vmem %s221, %s593 [#allocation7]
        %v595 = vld [vmem:[%s594] sm:$0xff]
        %v596 = vand.u32 2147483647, %v595
        %v597 = vsub.f32 0.0, %v596
        %v598 = vmul.f32 %v597, 1.442695
        %v599 = vpow.pop %v598
        %v600 = vadd.f32 %v599, 1.0
        %v601 = vlog2.pop %v600
        %v602 = vmul.f32 %v601, 0.6931472
        %v603 = vmul.f32 -0.5, %v599
        %v604 = vadd.f32 %v603, 1.0
        %v605 = vmul.f32 %v604, %v599
        %v606 = vand.u32 2147483647, %v599
        %vm607 = vcmp.lt.f32.partialorder %v606, 0.0004427343
        %v608 = vsel %vm607, %v605, %v602
        %v609 = vmax.f32 %v595, 0.0
        %v610 = vadd.f32 %v599, 1.0
        %v611 = vrcp.pop %v610
        %v612 = vmul.f32 %v610, %v611
        %v613 = vsub.f32 1.0, %v612
        %v614 = vmul.f32 %v611, %v613
        %v615 = vadd.f32 %v611, %v614
        %vm616 = vweird.f32 %v610
        %vm617 = vweird.f32 %v611
        %vm618 = vmor %vm616, %vm617
        %v619 = vsel %vm618, %v611, %v615
        %v620 = vand.u32 2147483647, %v610
        %vm621 = vcmp.eq.f32.partialorder %v620, 8.507059e+37
        %v622 = vand.u32 %v610, 2147483648
        %v623 = vor.u32 1.1754944e-38, %v622
        %v624 = vsel %vm621, %v623, %v619
        %v625 = vmul.f32 1.0, %v624
        %vm626 = vcmp.ge.f32.partialorder %v595, 0.0
        %v627 = vmul.f32 %v599, %v625
        %v628 = vsel %vm626, %v625, %v627
        %v629 = vsel %vm626, %v627, %v625
        %v630 = vmul.f32 %v629, 0.25
        %v631 = vmul.f32 %v630, %v629
        %v632 = vsub.f32 %v609, %v595
        %v633 = vadd.f32 %v632, %v608
        %v634 = vmul.f32 %v631, %v633
        %v635 = vmul.f32 %v628, 0.75
        %v636 = vmul.f32 %v635, %v628
        %v637 = vadd.f32 %v609, %v608
        %v638 = vmul.f32 %v636, %v637
        %v639 = vld [vmem:[%s221] sm:$0xff]
        %s640 = scalar_lea.vmem %s221, %s253 [#allocation7]
        %v641 = vld [vmem:[%s640] sm:$0xff]
        %s642 = scalar_lea.vmem %s221, %s256 [#allocation7]
        %v643 = vld [vmem:[%s642] sm:$0xff]
        %s644 = scalar_lea.vmem %s221, %s259 [#allocation7]
        %v645 = vld [vmem:[%s644] sm:$0xff]
        %v646 = vadd.f32 %v639, %v643
        %v647 = vadd.f32 %v562, %v565
        %v648 = vmin.f32 %v646, %v647
        %v649 = vmax.f32 %v639, %v562
        %v650 = vsub.f32 %v648, %v649
        %v651 = vmax.f32 %v650, 0.0
        %v652 = vadd.f32 %v641, %v645
        %v653 = vadd.f32 %v563, %v567
        %v654 = vmin.f32 %v652, %v653
        %v655 = vmax.f32 %v641, %v563
        %v656 = vsub.f32 %v654, %v655
        %v657 = vmax.f32 %v656, 0.0
        %v658 = vmul.f32 %v651, %v657
        %v659 = vmul.f32 %v643, %v645
        %v660 = vmul.f32 %v565, %v567
        %v661 = vadd.f32 %v659, %v660
        %v662 = vsub.f32 %v661, %v658
        %v663 = vrcp.pop %v662
        %v664 = vmul.f32 %v662, %v663
        %v665 = vsub.f32 1.0, %v664
        %v666 = vmul.f32 %v663, %v665
        %v667 = vadd.f32 %v663, %v666
        %vm668 = vweird.f32 %v662
        %vm669 = vweird.f32 %v663
        %vm670 = vmor %vm668, %vm669
        %v671 = vsel %vm670, %v663, %v667
        %v672 = vand.u32 2147483647, %v662
        %vm673 = vcmp.eq.f32.partialorder %v672, 8.507059e+37
        %v674 = vand.u32 %v662, 2147483648
        %v675 = vor.u32 1.1754944e-38, %v674
        %v676 = vsel %vm673, %v675, %v671
        %v677 = vmul.f32 %v658, %v676
        %v678 = vadd.f32 %v677, 0.01
        %v679 = vlog2.pop %v678
        %v680 = vmul.f32 %v679, 0.6931472
        %v681 = vsub.f32 0.0, %v680
        %v682 = vsel %vm591, %v634, 0.0
        %v683 = vadd.f32 %v682, 0.0
        %v684 = vsel %vm592, %v638, 0.0
        %v685 = vadd.f32 %v684, 0.0
        %v686 = vsel %vm591, %v681, 0.0
        %v687 = vadd.f32 %v686, 0.0
        %v688 = vsel %vm591, 1.0, 0.0
        %v689 = vadd.f32 %v688, 0.0
        %v690 = vsel %vm592, 1.0, 0.0
        %v691 = vadd.f32 %v690, 0.0
        %692 = vst [vmem:[%s245] sm:$0xff] %v683
        %693 = vst [vmem:[%s245 + $0x8] sm:$0xff] %v685
        %694 = vst [vmem:[%s245 + $0x10] sm:$0xff] %v687
        %695 = vst [vmem:[%s245 + $0x18] sm:$0xff] %v689
        %696 = vst [vmem:[%s245 + $0x20] sm:$0xff] %v691
        %s697 = sand.u32 %s119, 1
        %s698 = scalar_lea.sflag [#allocation4], %s697
        %s699 = sand.u32 %s119, 1
        %s700 = smul.addr %s699, 40
        %s701 = scalar_lea.vmem [#allocation9], %s700
        // Predicated region
        $region45: #{tpu_custom_call.1} parent=31 // pred_check
          %p702 = pneg %p129
        $region46: #{tpu_custom_call.1} parent=31 // pred_check_branch
          %704 = sbr.rel (%p702) target = $region48
        $region47: #{tpu_custom_call.1} parent=31 // pred_region
          %706 = vsyncadd %s698, 0
          %s707 = smul.addr %s26, 5
          %s708 = smul.addr %s27, 5
          %s709 = sadd.s32 %s707, %s708
          %s710 = smul.addr %s709, 8
          %s711 = scalar_lea.hbm %s3, %s710
          %s712 = sshll.u32 %s701, 4
          %s713 = int_to_ptr.vmem [resolvable:$true] %s712
          %s714 = sshll.u32 %s711, 4
          %s715 = int_to_ptr.hbm [resolvable:$true] %s714
          %720 = dma.vmem_to_hbm [thread:$0]  %s713, 640, %s715, %s698, 128, 128, 8
        $region48: #{tpu_custom_call.1} parent=31 // pred_fallthru
          _
      $region32: #{tpu_custom_call.1} parent=5 // pred_fallthru
        _
      %p721 = scmp.le.s32.totalorder 2, %s17
      // Predicated region
      $region49: #{tpu_custom_call.1} parent=5 // pred_check
        %p722 = pneg %p721
      $region50: #{tpu_custom_call.1} parent=5 // pred_check_branch
        %724 = sbr.rel (%p722) target = $region52
      $region51: #{tpu_custom_call.1} parent=5 // pred_region
        %s725 = ssub.s32 %s17, 2
        // Predicated region
        $region53: #{tpu_custom_call.1} parent=51 // pred_check
          %p726 = pneg %p135
        $region54: #{tpu_custom_call.1} parent=51 // pred_check_branch
          %728 = sbr.rel (%p726) target = $region56
        $region55: #{tpu_custom_call.1} parent=51 // pred_region
          %s729 = sand.u32 %s120, 1
          %s730 = scalar_lea.sflag [#allocation4], %s729
          %s731 = sand.u32 %s120, 1
          %s732 = smul.addr %s731, 40
          %s733 = scalar_lea.vmem [#allocation9], %s732
          %735 = dma.done %s730, 640
        $region56: #{tpu_custom_call.1} parent=51 // pred_fallthru
          _
      $region52: #{tpu_custom_call.1} parent=5 // pred_fallthru
        _
    $region6: #{tpu_custom_call.1} parent=1 // loop_footer
      %s21 = sadd.s32 1, %s17
    $region7: #{tpu_custom_call.1} parent=1 // loop_footer_branch
      %16 = sbr.rel target = $region3
    $region8: #{tpu_custom_call.1} parent=1 // loop_exit
      _
    %736 = vsyncpa [#allocation3], 1
    %s737 = scalar_lea.sflag [#allocation3], 1
    %738 = vsyncpa %s737, 1
    %739 = vsyncpa [#allocation8], 1
    %s740 = scalar_lea.sflag [#allocation8], 1
    %741 = vsyncpa %s740, 1
    %742 = vsyncpa [#allocation4], 1
    %s743 = scalar_lea.sflag [#allocation4], 1
    %744 = vsyncpa %s743, 1
    %745 = vsyncpa [#allocation5], 1
    %s746 = scalar_lea.sflag [#allocation5], 1
    %747 = vsyncpa %s746, 1

</llo_original>
